<compile_context>
chip_gen: v7x
topology: tpu7x:2x2x1
jax: 0.10.0
libtpu: 0.0.40
codegen_flags: <defaults>
</compile_context>

<pallas_src>
import functools
import math

import jax
import jax.numpy as jnp
from jax.experimental import pallas as pl
from jax.experimental.pallas import tpu as pltpu


def _round_up(x, m):
    return (x + m - 1) // m * m


# --------------------- MXU matmul (M/N/K-tiled, bf16) -----------------------
# f32 accumulation in a VMEM scratch; bf16 (or f32) output written at the
# final k step; optional fused bias (folded into the acc init) or fused
# per-column sum / sum-of-squares stats for BatchNorm.

def _mm_kernel(a_ref, b_ref, o_ref, acc_ref):
    @pl.when(pl.program_id(2) == 0)
    def _():
        acc_ref[...] = jnp.zeros_like(acc_ref)

    acc_ref[...] += jnp.dot(a_ref[...], b_ref[...],
                            preferred_element_type=jnp.float32)

    @pl.when(pl.program_id(2) == pl.num_programs(2) - 1)
    def _():
        o_ref[...] = acc_ref[...].astype(o_ref.dtype)


def _mm_bias_kernel(a_ref, b_ref, bias_ref, o_ref, acc_ref):
    @pl.when(pl.program_id(2) == 0)
    def _():
        acc_ref[...] = jnp.broadcast_to(bias_ref[...], acc_ref.shape)

    acc_ref[...] += jnp.dot(a_ref[...], b_ref[...],
                            preferred_element_type=jnp.float32)

    @pl.when(pl.program_id(2) == pl.num_programs(2) - 1)
    def _():
        o_ref[...] = acc_ref[...].astype(o_ref.dtype)


def _mm_stats_kernel(a_ref, b_ref, o_ref, sum_ref, sq_ref, acc_ref):
    @pl.when(pl.program_id(2) == 0)
    def _():
        acc_ref[...] = jnp.zeros_like(acc_ref)

    acc_ref[...] += jnp.dot(a_ref[...], b_ref[...],
                            preferred_element_type=jnp.float32)

    @pl.when(pl.program_id(2) == pl.num_programs(2) - 1)
    def _():
        acc = acc_ref[...]
        o_ref[...] = acc.astype(o_ref.dtype)
        sum_ref[0] = jnp.sum(acc, axis=0, keepdims=True)
        sq_ref[0] = jnp.sum(acc * acc, axis=0, keepdims=True)


def matmul_pallas(a, b, bias=None, *, stats=False, out_dtype=jnp.bfloat16):
    """(M, K) @ (K, N) [+ bias].  bf16 MXU operands, f32 accumulation.
    If stats=True also returns per-column (sum, sumsq) over the M rows."""
    assert not (bias is not None and stats)
    M, K = a.shape
    K2, N = b.shape
    assert K == K2

    if M >= 512:
        tm = 512
    elif M >= 256:
        tm = 256
    elif M >= 128:
        tm = 128
    else:
        tm = _round_up(M, 16)
    Np = _round_up(N, 256)
    tn = 512 if Np % 512 == 0 else 256
    Kp = _round_up(K, 128)
    tk = 128
    for cand in (2048, 1024, 512, 256):
        if Kp % cand == 0:
            tk = cand
            break
    Mp = _round_up(M, tm)

    a_bf = a.astype(jnp.bfloat16)
    b_bf = b.astype(jnp.bfloat16)
    if (Mp, Kp) != (M, K):
        a_bf = jnp.pad(a_bf, ((0, Mp - M), (0, Kp - K)))
    if (Kp, Np) != (K, N):
        b_bf = jnp.pad(b_bf, ((0, Kp - K), (0, Np - N)))

    gm, gn, gk = Mp // tm, Np // tn, Kp // tk
    in_specs = [pl.BlockSpec((tm, tk), lambda i, j, k: (i, k)),
                pl.BlockSpec((tk, tn), lambda i, j, k: (k, j))]
    operands = [a_bf, b_bf]
    out_shapes = [jax.ShapeDtypeStruct((Mp, Np), out_dtype)]
    out_specs = [pl.BlockSpec((tm, tn), lambda i, j, k: (i, j))]

    if bias is not None:
        kernel = _mm_bias_kernel
        bias_p = bias.astype(jnp.float32).reshape(1, N)
        if Np != N:
            bias_p = jnp.pad(bias_p, ((0, 0), (0, Np - N)))
        in_specs.append(pl.BlockSpec((1, tn), lambda i, j, k: (0, j)))
        operands.append(bias_p)
    elif stats:
        kernel = _mm_stats_kernel
        out_shapes += [jax.ShapeDtypeStruct((gm, 1, Np), jnp.float32),
                       jax.ShapeDtypeStruct((gm, 1, Np), jnp.float32)]
        out_specs += [pl.BlockSpec((1, 1, tn), lambda i, j, k: (i, 0, j)),
                      pl.BlockSpec((1, 1, tn), lambda i, j, k: (i, 0, j))]
    else:
        kernel = _mm_kernel

    multi = len(out_shapes) > 1
    res = pl.pallas_call(
        kernel,
        out_shape=tuple(out_shapes) if multi else out_shapes[0],
        grid=(gm, gn, gk),
        in_specs=in_specs,
        out_specs=tuple(out_specs) if multi else out_specs[0],
        scratch_shapes=[pltpu.VMEM((tm, tn), jnp.float32)],
        compiler_params=pltpu.CompilerParams(
            dimension_semantics=("parallel", "parallel", "arbitrary"),
            vmem_limit_bytes=32 * 1024 * 1024),
    )(*operands)

    if stats:
        y, s, q = res
        y = y[:M, :N]
        return y, s.sum(axis=(0, 1))[:N], q.sum(axis=(0, 1))[:N]
    y = res
    return y[:M, :N]


# -------------- direct 3x3 / stride-1 / pad-1 conv (no im2col) --------------
# Grid: (H output rows, out-channel tiles, 3 vertical taps, in-channel tiles).
# The 3 horizontal taps are unrolled in-kernel as static row slices of the
# full padded input row held in VMEM.  Per-channel sum / sumsq emitted for BN.

def _conv3x3_kernel(x_ref, w_ref, y_ref, sum_ref, sq_ref, acc_ref, *, Wo, Nb):
    dh = pl.program_id(2)
    kk = pl.program_id(3)

    @pl.when((dh == 0) & (kk == 0))
    def _():
        acc_ref[...] = jnp.zeros_like(acc_ref)

    for n in range(Nb):
        xr = x_ref[n, 0].astype(jnp.float32)            # (Wo+2, tk)
        acc = acc_ref[n]                                 # (Wo, tn) f32
        for dw in range(3):
            xs = xr[dw:dw + Wo, :].astype(jnp.bfloat16)
            acc = acc + jnp.dot(xs, w_ref[0, dw],
                                preferred_element_type=jnp.float32)
        acc_ref[n] = acc

    @pl.when((dh == pl.num_programs(2) - 1) & (kk == pl.num_programs(3) - 1))
    def _():
        a = acc_ref[...]                                 # (Nb, Wo, tn) f32
        for n in range(Nb):
            y_ref[n, 0] = a[n].astype(y_ref.dtype)
        s = jnp.sum(a, axis=1)                           # (Nb, tn)
        sum_ref[0] = jnp.sum(s, axis=0, keepdims=True)
        sq = jnp.sum(a * a, axis=1)
        sq_ref[0] = jnp.sum(sq, axis=0, keepdims=True)


def conv3x3_direct_pallas(x_bf, w):
    """x_bf: (N, H, W, C) bf16, w: (O, C, 3, 3).  stride 1, pad 1.
    Returns y (N, H, W, O) bf16 plus per-channel sum / sumsq (f32)."""
    N, H, W, C = x_bf.shape
    O = w.shape[0]
    Cp = _round_up(C, 128)
    Op = _round_up(O, 128)
    tn = 256 if Op % 256 == 0 else 128
    tk = 512 if Cp % 512 == 0 else (256 if Cp % 256 == 0 else 128)

    xp = jnp.pad(x_bf, ((0, 0), (1, 1), (1, 1), (0, Cp - C)))
    wr = jnp.transpose(w, (2, 3, 1, 0)).astype(jnp.bfloat16)      # (3,3,C,O)
    wr = jnp.pad(wr, ((0, 0), (0, 0), (0, Cp - C), (0, Op - O)))

    kernel = functools.partial(_conv3x3_kernel, Wo=W, Nb=N)
    y, s, q = pl.pallas_call(
        kernel,
        out_shape=(jax.ShapeDtypeStruct((N, H, W, Op), jnp.bfloat16),
                   jax.ShapeDtypeStruct((H, 1, Op), jnp.float32),
                   jax.ShapeDtypeStruct((H, 1, Op), jnp.float32)),
        grid=(H, Op // tn, 3, Cp // tk),
        in_specs=[pl.BlockSpec((N, 1, W + 2, tk),
                               lambda h, j, d, k: (0, h + d, 0, k)),
                  pl.BlockSpec((1, 3, tk, tn),
                               lambda h, j, d, k: (d, 0, k, j))],
        out_specs=(pl.BlockSpec((N, 1, W, tn), lambda h, j, d, k: (0, h, 0, j)),
                   pl.BlockSpec((1, 1, tn), lambda h, j, d, k: (h, 0, j)),
                   pl.BlockSpec((1, 1, tn), lambda h, j, d, k: (h, 0, j))),
        scratch_shapes=[pltpu.VMEM((N, W, tn), jnp.float32)],
        compiler_params=pltpu.CompilerParams(
            dimension_semantics=("parallel", "parallel",
                                 "arbitrary", "arbitrary"),
            vmem_limit_bytes=32 * 1024 * 1024),
    )(xp, wr)
    col_sum = s.sum(axis=(0, 1))[:O]
    col_sq = q.sum(axis=(0, 1))[:O]
    if Op != O:
        y = y[..., :O]
    return y, col_sum, col_sq


# --------------------- row-tiled elementwise (bf16 in/out) ------------------

def _ew_row_tile(M, C, n_bufs):
    # keep the double-buffered footprint well inside v5e's 16 MiB scoped VMEM
    budget = 6 * 1024 * 1024
    tr = budget // max(1, n_bufs * 2 * C * 2)
    tr = max(16, min(2048, (tr // 16) * 16))
    tr = min(tr, _round_up(M, 16))
    return tr


def _rowwise(kernel, row_arrays, vec_arrays, out_dtype):
    M, C = row_arrays[0].shape
    tr = _ew_row_tile(M, C, len(row_arrays) + 1)
    Mp = _round_up(M, tr)
    rows = [jnp.pad(a, ((0, Mp - M), (0, 0))) if Mp != M else a
            for a in row_arrays]
    in_specs = ([pl.BlockSpec((tr, C), lambda i: (i, 0)) for _ in row_arrays]
                + [pl.BlockSpec((1, C), lambda i: (0, 0)) for _ in vec_arrays])
    out = pl.pallas_call(
        kernel,
        out_shape=jax.ShapeDtypeStruct((Mp, C), out_dtype),
        grid=(Mp // tr,),
        in_specs=in_specs,
        out_specs=pl.BlockSpec((tr, C), lambda i: (i, 0)),
        compiler_params=pltpu.CompilerParams(
            dimension_semantics=("parallel",)),
    )(*rows, *vec_arrays)
    return out[:M] if Mp != M else out


def _affine_kernel(x_ref, scale_ref, shift_ref, o_ref, *, relu):
    y = x_ref[...].astype(jnp.float32) * scale_ref[...] + shift_ref[...]
    if relu:
        y = jnp.maximum(y, 0.0)
    o_ref[...] = y.astype(o_ref.dtype)


def _tail_idt_kernel(x_ref, idt_ref, scale_ref, shift_ref, o_ref):
    y = x_ref[...].astype(jnp.float32) * scale_ref[...] + shift_ref[...]
    y = y + idt_ref[...].astype(jnp.float32)
    o_ref[...] = jnp.maximum(y, 0.0).astype(o_ref.dtype)


def _tail_down_kernel(x_ref, z_ref, s1_ref, b1_ref, s2_ref, b2_ref, o_ref):
    y = x_ref[...].astype(jnp.float32) * s1_ref[...] + b1_ref[...]
    y = y + z_ref[...].astype(jnp.float32) * s2_ref[...] + b2_ref[...]
    o_ref[...] = jnp.maximum(y, 0.0).astype(o_ref.dtype)


def affine_pallas(x2d, scale, shift, relu=True):
    return _rowwise(functools.partial(_affine_kernel, relu=relu),
                    [x2d], [scale, shift], jnp.bfloat16)


# -------------------- attention core (MXU bf16, head-tiled) -----------------

def _attn_kernel(q_ref, k_ref, v_ref, o_ref):
    s = jnp.einsum('bqd,bkd->bqk', q_ref[...], k_ref[...],
                   preferred_element_type=jnp.float32)
    m = jnp.max(s, axis=-1, keepdims=True)
    p = jnp.exp(s - m)
    l = jnp.sum(p, axis=-1, keepdims=True)
    o = jnp.einsum('bqk,bkd->bqd', p.astype(jnp.bfloat16), v_ref[...],
                   preferred_element_type=jnp.float32)
    o_ref[...] = o * pl.reciprocal(l, approx=True)


def attention_pallas(q, k, v):
    """q, k, v: (batch*heads, L, head_dim) -> (batch*heads, L, head_dim) f32.
    TODO(synk): pack several heads along the lane axis so the PV output store
    is 128-lane dense (head_dim alone is below the lane width)."""
    BH, L, D = q.shape
    tb = min(32, BH)
    BHp = _round_up(BH, tb)
    if BHp != BH:
        pad = ((0, BHp - BH), (0, 0), (0, 0))
        q, k, v = (jnp.pad(t, pad) for t in (q, k, v))
    out = pl.pallas_call(
        _attn_kernel,
        out_shape=jax.ShapeDtypeStruct((BHp, L, D), jnp.float32),
        grid=(BHp // tb,),
        in_specs=[pl.BlockSpec((tb, L, D), lambda i: (i, 0, 0))] * 3,
        out_specs=pl.BlockSpec((tb, L, D), lambda i: (i, 0, 0)),
        compiler_params=pltpu.CompilerParams(
            dimension_semantics=("parallel",)),
    )(q.astype(jnp.bfloat16), k.astype(jnp.bfloat16), v.astype(jnp.bfloat16))
    return out[:BH]


# ------------------------------- glue (JAX) ---------------------------------

def _im2col(x, kh, kw, stride, pad):
    N, H, W, C = x.shape
    xp = jnp.pad(x, ((0, 0), (pad, pad), (pad, pad), (0, 0)))
    Ho = (H + 2 * pad - kh) // stride + 1
    Wo = (W + 2 * pad - kw) // stride + 1
    cols = []
    for i in range(kh):
        for j in range(kw):
            cols.append(xp[:, i:i + (Ho - 1) * stride + 1:stride,
                           j:j + (Wo - 1) * stride + 1:stride, :])
    patches = jnp.concatenate(cols, axis=-1)
    return patches.reshape(N * Ho * Wo, kh * kw * C), (N, Ho, Wo)


def conv2d_stats_pallas(x, w, stride=1, pad=0):
    """NHWC conv with fused per-channel sum/sumsq (for BatchNorm).
    Returns (y bf16 NHWC, col_sum, col_sq)."""
    N, H, W, C = x.shape
    O, I, kh, kw = w.shape
    x_bf = x.astype(jnp.bfloat16)
    if kh == 1 and kw == 1 and stride == 1 and pad == 0:
        wmat = w.reshape(O, I).T
        y2, s, q = matmul_pallas(x_bf.reshape(-1, C), wmat, stats=True)
        return y2.reshape(N, H, W, O), s, q
    if kh == 3 and kw == 3 and stride == 1 and pad == 1 and N * H * W >= 9 * O:
        return conv3x3_direct_pallas(x_bf, w)
    # TODO(synk): stride-2 stem conv and channel-heavy tiny-spatial 3x3 convs
    # still use bf16 im2col patches + matmul.
    patches, (N2, Ho, Wo) = _im2col(x_bf, kh, kw, stride, pad)
    wmat = jnp.transpose(w, (2, 3, 1, 0)).reshape(kh * kw * I, O)
    y2, s, q = matmul_pallas(patches, wmat, stats=True)
    return y2.reshape(N2, Ho, Wo, O), s, q


def _bn_scale_shift(col_sum, col_sq, count, gamma, beta, eps=1e-5):
    # training-mode batch statistics (biased variance), PyTorch BN default
    mean = col_sum / count
    var = jnp.maximum(col_sq / count - mean * mean, 0.0)
    scale = gamma.astype(jnp.float32) * jax.lax.rsqrt(var + eps)
    shift = beta.astype(jnp.float32) - mean * scale
    return scale.reshape(1, -1), shift.reshape(1, -1)


def conv_bn_relu(x, w, gamma, beta, stride=1, pad=0, relu=True):
    y, s, q = conv2d_stats_pallas(x, w, stride, pad)
    N, Ho, Wo, O = y.shape
    scale, shift = _bn_scale_shift(s, q, N * Ho * Wo, gamma, beta)
    y2 = affine_pallas(y.reshape(-1, O), scale, shift, relu=relu)
    return y2.reshape(N, Ho, Wo, O)


def conv_bn_params(x, w, gamma, beta):
    """1x1 conv + BN stats; affine is deferred to the fused residual tail."""
    y, s, q = conv2d_stats_pallas(x, w, 1, 0)
    N, Ho, Wo, O = y.shape
    scale, shift = _bn_scale_shift(s, q, N * Ho * Wo, gamma, beta)
    return y, scale, shift


def avgpool2d(x, s):
    # TODO(synk): pooling stays as XLA glue (cheap, fuses with neighbours).
    N, H, W, C = x.shape
    Hs, Ws = (H // s) * s, (W // s) * s
    xs = x[:, :Hs, :Ws, :].astype(jnp.float32)
    out = xs.reshape(N, Hs // s, s, Ws // s, s, C).mean(axis=(2, 4))
    return out.astype(jnp.bfloat16)


def bottleneck_forward(x, p):
    stride = p['stride']
    out = conv_bn_relu(x, p['conv1_w'], p['bn1_g'], p['bn1_b'])
    out = conv_bn_relu(out, p['conv2_w'], p['bn2_g'], p['bn2_b'], pad=1)
    if stride > 1:
        out = avgpool2d(out, stride)
    y3, sc3, sh3 = conv_bn_params(out, p['conv3_w'], p['bn3_g'], p['bn3_b'])
    N, Ho, Wo, C4 = y3.shape
    if 'down_w' in p:
        idt = avgpool2d(x, stride) if stride > 1 else x
        yd, scd, shd = conv_bn_params(idt, p['down_w'], p['down_g'], p['down_b'])
        out2 = _rowwise(_tail_down_kernel,
                        [y3.reshape(-1, C4), yd.reshape(-1, C4)],
                        [sc3, sh3, scd, shd], jnp.bfloat16)
    else:
        out2 = _rowwise(_tail_idt_kernel,
                        [y3.reshape(-1, C4), x.reshape(-1, C4)],
                        [sc3, sh3], jnp.bfloat16)
    return out2.reshape(N, Ho, Wo, C4)


def attnpool_forward(x_nhwc, p, num_heads, spacial_dim):
    B, H, W, C = x_nhwc.shape
    x = x_nhwc.astype(jnp.float32).reshape(B, H * W, C).transpose(1, 0, 2)
    x = jnp.concatenate([x.mean(axis=0, keepdims=True), x], axis=0)   # (L,B,C)
    L = x.shape[0]

    pe = p['pos_emb']
    cls_pos = pe[0:1]
    spatial = pe[1:].reshape(spacial_dim, spacial_dim, C)
    if (spacial_dim, spacial_dim) != (H, W):
        # TODO(synk): matches F.interpolate(mode='bilinear',
        # align_corners=False); identity at the demo resolution.
        spatial = jax.image.resize(spatial, (H, W, C), method='bilinear')
    pos = jnp.concatenate([cls_pos, spatial.reshape(H * W, C)], axis=0)
    x = x + pos[:, None, :]

    head_dim = C // num_heads
    scale = head_dim ** -0.5
    # Fused QKV projection; q-scale folded into q weights/bias, bias folded
    # into the matmul accumulator init.
    w_qkv = jnp.concatenate([p['q_w'].T * scale, p['k_w'].T, p['v_w'].T], axis=1)
    b_qkv = jnp.concatenate([p['q_b'] * scale, p['k_b'], p['v_b']], axis=0)

    xf = x.reshape(L * B, C)
    qkv = matmul_pallas(xf, w_qkv, bias=b_qkv, out_dtype=jnp.bfloat16)
    q, k, v = qkv[:, :C], qkv[:, C:2 * C], qkv[:, 2 * C:]

    def split_heads(t):
        return t.reshape(L, B * num_heads, head_dim).transpose(1, 0, 2)

    o = attention_pallas(split_heads(q), split_heads(k), split_heads(v))
    o = o.transpose(1, 0, 2).reshape(L * B, C)

    out = matmul_pallas(o, p['c_w'].T, bias=p['c_b'], out_dtype=jnp.float32)
    out_dim = out.shape[-1]
    out = out.reshape(L, B, out_dim).transpose(1, 2, 0)               # (B,D,L)
    global_feat = out[:, :, 0]
    feature_map = out[:, :, 1:].reshape(B, out_dim, H, W)
    return global_feat, feature_map


def clip_resnet_forward(params, x_nchw, *, input_resolution, num_heads=32):
    x = jnp.transpose(x_nchw.astype(jnp.float32), (0, 2, 3, 1))   # NCHW->NHWC
    s = params['stem']
    x = conv_bn_relu(x, s['conv1_w'], s['bn1_g'], s['bn1_b'], stride=2, pad=1)
    x = conv_bn_relu(x, s['conv2_w'], s['bn2_g'], s['bn2_b'], pad=1)
    x = conv_bn_relu(x, s['conv3_w'], s['bn3_g'], s['bn3_b'], pad=1)
    x = avgpool2d(x, 2)

    outs = []
    for name in ('layer1', 'layer2', 'layer3', 'layer4'):
        for bp in params[name]:
            x = bottleneck_forward(x, bp)
        outs.append(jnp.transpose(x.astype(jnp.float32), (0, 3, 1, 2)))

    g, fmap = attnpool_forward(x, params['attnpool'], num_heads,
                               input_resolution // 32)
    outs.append([g, fmap])
    return tuple(outs)


# ----------------------- deterministic parameter init -----------------------

class _KeyGen:
    def __init__(self, key):
        self._key = key

    def __call__(self):
        self._key, sub = jax.random.split(self._key)
        return sub


def _conv_init(kg, out_ch, in_ch, ksize):
    scale = 1.0 / math.sqrt(in_ch * ksize * ksize)
    return scale * jax.random.normal(kg(), (out_ch, in_ch, ksize, ksize),
                                     jnp.float32)


def _bn_init(kg, ch):
    g = 1.0 + 0.1 * jax.random.normal(kg(), (ch,), jnp.float32)
    b = 0.1 * jax.random.normal(kg(), (ch,), jnp.float32)
    return g, b


def _linear_init(kg, out_f, in_f):
    w = (1.0 / math.sqrt(in_f)) * jax.random.normal(kg(), (out_f, in_f),
                                                    jnp.float32)
    b = 0.01 * jax.random.normal(kg(), (out_f,), jnp.float32)
    return w, b


def init_params(key, layers, width, input_resolution, output_dim):
    kg = _KeyGen(key)
    params = {}
    w2 = width // 2
    g1, b1 = _bn_init(kg, w2)
    g2, b2 = _bn_init(kg, w2)
    g3, b3 = _bn_init(kg, width)
    params['stem'] = dict(
        conv1_w=_conv_init(kg, w2, 3, 3), bn1_g=g1, bn1_b=b1,
        conv2_w=_conv_init(kg, w2, w2, 3), bn2_g=g2, bn2_b=b2,
        conv3_w=_conv_init(kg, width, w2, 3), bn3_g=g3, bn3_b=b3,
    )
    inplanes = width
    for li, (mult, nblocks, stride) in enumerate(
            zip((1, 2, 4, 8), layers, (1, 2, 2, 2)), start=1):
        planes = width * mult
        blocks = []
        for bi in range(nblocks):
            s = stride if bi == 0 else 1
            bp = {'stride': s}
            bp['conv1_w'] = _conv_init(kg, planes, inplanes, 1)
            bp['bn1_g'], bp['bn1_b'] = _bn_init(kg, planes)
            bp['conv2_w'] = _conv_init(kg, planes, planes, 3)
            bp['bn2_g'], bp['bn2_b'] = _bn_init(kg, planes)
            bp['conv3_w'] = _conv_init(kg, planes * 4, planes, 1)
            bp['bn3_g'], bp['bn3_b'] = _bn_init(kg, planes * 4)
            if s > 1 or inplanes != planes * 4:
                bp['down_w'] = _conv_init(kg, planes * 4, inplanes, 1)
                bp['down_g'], bp['down_b'] = _bn_init(kg, planes * 4)
            blocks.append(bp)
            inplanes = planes * 4
        params['layer%d' % li] = blocks

    embed_dim = width * 32
    sd = input_resolution // 32
    qw, qb = _linear_init(kg, embed_dim, embed_dim)
    kw, kb = _linear_init(kg, embed_dim, embed_dim)
    vw, vb = _linear_init(kg, embed_dim, embed_dim)
    cw, cb = _linear_init(kg, output_dim, embed_dim)
    params['attnpool'] = dict(
        pos_emb=jax.random.normal(kg(), (sd * sd + 1, embed_dim), jnp.float32)
                / math.sqrt(embed_dim),
        q_w=qw, q_b=qb, k_w=kw, k_b=kb, v_w=vw, v_b=vb, c_w=cw, c_b=cb)
    return params


# ----------------------------------- main -----------------------------------

if __name__ == "__main__":
    key = jax.random.PRNGKey(0)
    pkey, xkey = jax.random.split(key)

    # Small config consistent with the module: layers=(1,1,1,1), width=8,
    # input_resolution=32 (attnpool spacial_dim=1), output_dim=32,
    # num_heads=32 (hard-coded in the PyTorch module), embed_dim=width*32=256.
    layers = (1, 1, 1, 1)
    width = 8
    input_resolution = 32
    output_dim = 32

    params = init_params(pkey, layers, width, input_resolution, output_dim)
    x = jax.random.normal(xkey, (2, 3, input_resolution, input_resolution),
                          dtype=jnp.float32)

    outs = clip_resnet_forward(params, x, input_resolution=input_resolution)
    for leaf in jax.tree_util.tree_leaves(outs):
        jax.block_until_ready(leaf)

    print("KERNEL_OK")
</pallas_src>

<mosaic_0001>
module attributes {stable_mosaic.version = 11 : i64} {
  func.func @_mm_stats_kernel(%arg0: i32, %arg1: i32, %arg2: i32, %arg3: memref<512x128xbf16, #tpu.memory_space<vmem>>, %arg4: memref<128x256xbf16, #tpu.memory_space<vmem>>, %arg5: memref<512x256xbf16, #tpu.memory_space<vmem>>, %arg6: memref<1x1x256xf32, #tpu.memory_space<vmem>>, %arg7: memref<1x1x256xf32, #tpu.memory_space<vmem>>, %arg8: memref<512x256xf32, #tpu.memory_space<vmem>>) attributes {dimension_semantics = [#tpu.dimension_semantics<parallel>, #tpu.dimension_semantics<parallel>, #tpu.dimension_semantics<arbitrary>], iteration_bounds = array<i64: 1, 1, 1>, scalar_prefetch = 0 : i64, scratch_operands = 1 : i64, tpu.core_type = #tpu.core_type<tc>, window_params = [{transform_indices = @transform_0, window_bounds = array<i64: 512, 128>}, {transform_indices = @transform_1, window_bounds = array<i64: 128, 256>}, {transform_indices = @transform_2, window_bounds = array<i64: 512, 256>}, {transform_indices = @transform_3, window_bounds = array<i64: 1, 1, 256>}, {transform_indices = @transform_4, window_bounds = array<i64: 1, 1, 256>}]} {
    %c0_i32 = arith.constant 0 : i32
    %0 = arith.cmpi eq, %arg2, %c0_i32 : i32
    %1 = arith.extui %0 : i1 to i32
    %c0_i32_0 = arith.constant 0 : i32
    %2 = arith.cmpi ne, %1, %c0_i32_0 : i32
    scf.if %2 {
      %cst_10 = arith.constant 0.000000e+00 : f32
      %12 = vector.broadcast %cst_10 : f32 to vector<512x256xf32>
      %c0_11 = arith.constant 0 : index
      %c0_12 = arith.constant 0 : index
      %13 = vector.load %arg8[%c0_11, %c0_12] : memref<512x256xf32, #tpu.memory_space<vmem>>, vector<512x256xf32>
      tpu.vector_store %arg8[%c0_11, %c0_12], %12 {strides = array<i32>} : memref<512x256xf32, #tpu.memory_space<vmem>>, vector<512x256xf32>,
    } else {
    }
    %c0 = arith.constant 0 : index
    %c0_1 = arith.constant 0 : index
    %3 = vector.load %arg8[%c0, %c0_1] : memref<512x256xf32, #tpu.memory_space<vmem>>, vector<512x256xf32>
    %c0_2 = arith.constant 0 : index
    %c0_3 = arith.constant 0 : index
    %4 = vector.load %arg3[%c0_2, %c0_3] : memref<512x128xbf16, #tpu.memory_space<vmem>>, vector<512x128xbf16>
    %c0_4 = arith.constant 0 : index
    %c0_5 = arith.constant 0 : index
    %5 = vector.load %arg4[%c0_4, %c0_5] : memref<128x256xbf16, #tpu.memory_space<vmem>>, vector<128x256xbf16>
    %cst = arith.constant dense<0.000000e+00> : vector<512x256xf32>
    %6 = tpu.matmul %4, %5, %cst {dimension_numbers = #tpu.dot_dimension_numbers<[1], [0], [0], [1], [0, 0, 1, 1], [], []>} : vector<512x128xbf16>, vector<128x256xbf16>, vector<512x256xf32> -> vector<512x256xf32>
    %7 = arith.addf %3, %6 : vector<512x256xf32>
    %c0_6 = arith.constant 0 : index
    %c0_7 = arith.constant 0 : index
    %8 = vector.load %arg8[%c0_6, %c0_7] : memref<512x256xf32, #tpu.memory_space<vmem>>, vector<512x256xf32>
    tpu.vector_store %arg8[%c0_6, %c0_7], %7 {strides = array<i32>} : memref<512x256xf32, #tpu.memory_space<vmem>>, vector<512x256xf32>,
    %c0_i32_8 = arith.constant 0 : i32
    %9 = arith.cmpi eq, %arg2, %c0_i32_8 : i32
    %10 = arith.extui %9 : i1 to i32
    %c0_i32_9 = arith.constant 0 : i32
    %11 = arith.cmpi ne, %10, %c0_i32_9 : i32
    scf.if %11 {
      %c0_10 = arith.constant 0 : index
      %c0_11 = arith.constant 0 : index
      %12 = vector.load %arg8[%c0_10, %c0_11] : memref<512x256xf32, #tpu.memory_space<vmem>>, vector<512x256xf32>
      %13 = arith.truncf %12 : vector<512x256xf32> to vector<512x256xbf16>
      %c0_12 = arith.constant 0 : index
      %c0_13 = arith.constant 0 : index
      %14 = vector.load %arg5[%c0_12, %c0_13] : memref<512x256xbf16, #tpu.memory_space<vmem>>, vector<512x256xbf16>
      tpu.vector_store %arg5[%c0_12, %c0_13], %13 {strides = array<i32>} : memref<512x256xbf16, #tpu.memory_space<vmem>>, vector<512x256xbf16>,
      %cst_14 = arith.constant dense<0.000000e+00> : vector<256xf32>
      %15 = vector.multi_reduction <add>, %12, %cst_14 [0] : vector<512x256xf32> to vector<256xf32>
      %16 = vector.shape_cast %15 : vector<256xf32> to vector<1x256xf32>
      %c0_15 = arith.constant 0 : index
      %c0_16 = arith.constant 0 : index
      %c0_17 = arith.constant 0 : index
      %17 = vector.load %arg6[%c0_15, %c0_16, %c0_17] : memref<1x1x256xf32, #tpu.memory_space<vmem>>, vector<1x1x256xf32>
      %18 = vector.shape_cast %17 : vector<1x1x256xf32> to vector<1x256xf32>
      %19 = vector.shape_cast %16 : vector<1x256xf32> to vector<1x1x256xf32>
      tpu.vector_store %arg6[%c0_15, %c0_16, %c0_17], %19 {strides = array<i32>} : memref<1x1x256xf32, #tpu.memory_space<vmem>>, vector<1x1x256xf32>,
      %20 = arith.mulf %12, %12 : vector<512x256xf32>
      %cst_18 = arith.constant dense<0.000000e+00> : vector<256xf32>
      %21 = vector.multi_reduction <add>, %20, %cst_18 [0] : vector<512x256xf32> to vector<256xf32>
      %22 = vector.shape_cast %21 : vector<256xf32> to vector<1x256xf32>
      %c0_19 = arith.constant 0 : index
      %c0_20 = arith.constant 0 : index
      %c0_21 = arith.constant 0 : index
      %23 = vector.load %arg7[%c0_19, %c0_20, %c0_21] : memref<1x1x256xf32, #tpu.memory_space<vmem>>, vector<1x1x256xf32>
      %24 = vector.shape_cast %23 : vector<1x1x256xf32> to vector<1x256xf32>
      %25 = vector.shape_cast %22 : vector<1x256xf32> to vector<1x1x256xf32>
      tpu.vector_store %arg7[%c0_19, %c0_20, %c0_21], %25 {strides = array<i32>} : memref<1x1x256xf32, #tpu.memory_space<vmem>>, vector<1x1x256xf32>,
    } else {
    }
    return
  }
  func.func @transform_0(%arg0: i32, %arg1: i32, %arg2: i32) -> (i32, i32) {
    %c0_i32 = arith.constant 0 : i32
    return %arg0, %arg2 : i32, i32
  }
  func.func @transform_1(%arg0: i32, %arg1: i32, %arg2: i32) -> (i32, i32) {
    %c0_i32 = arith.constant 0 : i32
    return %arg2, %arg1 : i32, i32
  }
  func.func @transform_2(%arg0: i32, %arg1: i32, %arg2: i32) -> (i32, i32) {
    %c0_i32 = arith.constant 0 : i32
    return %arg0, %arg1 : i32, i32
  }
  func.func @transform_3(%arg0: i32, %arg1: i32, %arg2: i32) -> (i32, i32, i32) {
    %c0_i32 = arith.constant 0 : i32
    %c0_i32_0 = arith.constant 0 : i32
    return %arg0, %c0_i32, %arg1 : i32, i32, i32
  }
  func.func @transform_4(%arg0: i32, %arg1: i32, %arg2: i32) -> (i32, i32, i32) {
    %c0_i32 = arith.constant 0 : i32
    %c0_i32_0 = arith.constant 0 : i32
    return %arg0, %c0_i32, %arg1 : i32, i32, i32
  }
}

</mosaic_0001>

<llo_original>
// kernel: tpu_custom_call.1
$region0: #{tpu_custom_call.1}
  #allocation0 [shape = 'u32[]', space=smem, size = 0x4, offset = 0x4, fixed_abs, tag = 'smem constant byte address 0x4 - core index']
  #allocation1 [shape = 'u32[144,128]{1,0:T(1,128)}', space=vmem, size = 0x12000, scoped, tag = 'internal scratch']
  #allocation2 [shape = 'f32[512,256]{1,0:T(8,128)}', space=vmem, size = 0x80000, scoped, tag = 'scratch operand']
  %s0 = inlined_call_operand.hbm [shape: bf16[512,128], index: 0, kind: input, shape index: {}]
  %s1 = inlined_call_operand.hbm [shape: bf16[128,256], index: 1, kind: input, shape index: {}]
  %s2 = inlined_call_operand.hbm [shape: bf16[512,256], index: 2, kind: output, shape index: {0}]
  %s3 = inlined_call_operand.hbm [shape: f32[1,1,256], index: 3, kind: output, shape index: {1}]
  %s4 = inlined_call_operand.hbm [shape: f32[1,1,256], index: 4, kind: output, shape index: {2}]
  %5 = xla_tuple %s2, %s3, %s4
  %s6 = sld [smem:[#allocation0]]
  $region50: #{tpu_custom_call.1} parent=0
    _
  %s8 = ssub.s32 1, %s6
  %s9 = scalar_select 0, %s8, %s6
  $region1: #{tpu_custom_call.1} parent=0
    #allocation3 [shape = 'u8[131072]{0}', space=vmem, size = 0x20000, scoped, tag = 'input window, operand 0, single buffered']
    #allocation4 [shape = 's32[1]{0}', space=sflag, size = 0x4, scoped, tag = 'scoped memory for tpu_custom_call.1']
    #allocation5 [shape = 's32[1]{0}', space=sflag, size = 0x4, scoped, tag = 'scoped memory for tpu_custom_call.1']
    #allocation6 [shape = 'u8[65536]{0}', space=vmem, size = 0x10000, scoped, tag = 'input window, operand 1, single buffered']
    #allocation7 [shape = 's32[1]{0}', space=sflag, size = 0x4, scoped, tag = 'scoped memory for tpu_custom_call.1']
    #allocation8 [shape = 'u8[262144]{0}', space=vmem, size = 0x40000, scoped, tag = 'output window, operand 0, single buffered']
    #allocation9 [shape = 'u8[1024]{0}', space=vmem, size = 0x400, scoped, tag = 'output window, operand 1, single buffered']
    #allocation10 [shape = 's32[1]{0}', space=sflag, size = 0x4, scoped, tag = 'scoped memory for tpu_custom_call.1']
    #allocation11 [shape = 'u8[1024]{0}', space=vmem, size = 0x400, scoped, tag = 'output window, operand 2, single buffered']
    %10 = vsyncpa [#allocation4], 0
    %11 = vsyncpa [#allocation7], 0
    %12 = vsyncpa [#allocation5], 0
    %13 = vsyncpa [#allocation10], 0
    // Predicated region
    $region2: #{tpu_custom_call.1} parent=1 // pred_check
      _
    $region3: #{tpu_custom_call.1} parent=1 // pred_check_branch
      %15 = sbr.rel (0) target = $region5
    $region4: #{tpu_custom_call.1} parent=1 // pred_region
      %s17 = ssub.s32 4096, 4096
      %18 = vsyncadd [#allocation4], %s17
      %s19 = sshll.u32 [#allocation3], 4
      %s20 = int_to_ptr.vmem [resolvable:$true] %s19
      %25 = dma.hbm_to_vmem [thread:$0]  %s0, 4096, %s20, [#allocation4], 64, 64, 4
    $region5: #{tpu_custom_call.1} parent=1 // pred_fallthru
      _
    // Predicated region
    $region6: #{tpu_custom_call.1} parent=1 // pred_check
      _
    $region7: #{tpu_custom_call.1} parent=1 // pred_check_branch
      %27 = sbr.rel (0) target = $region9
    $region8: #{tpu_custom_call.1} parent=1 // pred_region
      %s29 = ssub.s32 2048, 2048
      %30 = vsyncadd [#allocation7], %s29
      %s31 = sshll.u32 [#allocation6], 4
      %s32 = int_to_ptr.vmem [resolvable:$true] %s31
      %37 = dma.hbm_to_vmem [thread:$0]  %s1, 2048, %s32, [#allocation7], 128, 128, 8
    $region9: #{tpu_custom_call.1} parent=1 // pred_fallthru
      _
    // Predicated region
    $region10: #{tpu_custom_call.1} parent=1 // pred_check
      _
    $region11: #{tpu_custom_call.1} parent=1 // pred_check_branch
      %39 = sbr.rel (0) target = $region13
    $region12: #{tpu_custom_call.1} parent=1 // pred_region
      %40 = dma.done [#allocation4], 4096
    $region13: #{tpu_custom_call.1} parent=1 // pred_fallthru
      _
    // Predicated region
    $region14: #{tpu_custom_call.1} parent=1 // pred_check
      _
    $region15: #{tpu_custom_call.1} parent=1 // pred_check_branch
      %42 = sbr.rel (0) target = $region17
    $region16: #{tpu_custom_call.1} parent=1 // pred_region
      %43 = dma.done [#allocation7], 2048
    $region17: #{tpu_custom_call.1} parent=1 // pred_fallthru
      _
    %p45 = scmp.eq.s32.totalorder 0, 0
    // Predicated region
    $region18: #{tpu_custom_call.1} parent=1 // pred_check
      %p46 = pneg %p45
    $region19: #{tpu_custom_call.1} parent=1 // pred_check_branch
      %48 = sbr.rel (%p46) target = $region21
    $region20: #{tpu_custom_call.1} parent=1 // pred_region
      %49 = vst [vmem:[#allocation2] sm:$0xff] 0.0
      %50 = vst [vmem:[#allocation2 + $0x8] sm:$0xff] 0.0
      %51 = vst [vmem:[#allocation2 + $0x10] sm:$0xff] 0.0
      %52 = vst [vmem:[#allocation2 + $0x18] sm:$0xff] 0.0
      %53 = vst [vmem:[#allocation2 + $0x20] sm:$0xff] 0.0
      %54 = vst [vmem:[#allocation2 + $0x28] sm:$0xff] 0.0
      %55 = vst [vmem:[#allocation2 + $0x30] sm:$0xff] 0.0
      %56 = vst [vmem:[#allocation2 + $0x38] sm:$0xff] 0.0
      %57 = vst [vmem:[#allocation2 + $0x40] sm:$0xff] 0.0
      %58 = vst [vmem:[#allocation2 + $0x48] sm:$0xff] 0.0
      %59 = vst [vmem:[#allocation2 + $0x50] sm:$0xff] 0.0
      %60 = vst [vmem:[#allocation2 + $0x58] sm:$0xff] 0.0
      %61 = vst [vmem:[#allocation2 + $0x60] sm:$0xff] 0.0
      %62 = vst [vmem:[#allocation2 + $0x68] sm:$0xff] 0.0
      %63 = vst [vmem:[#allocation2 + $0x70] sm:$0xff] 0.0
      %64 = vst [vmem:[#allocation2 + $0x78] sm:$0xff] 0.0
      %65 = vst [vmem:[#allocation2 + $0x80] sm:$0xff] 0.0
      %66 = vst [vmem:[#allocation2 + $0x88] sm:$0xff] 0.0
      %67 = vst [vmem:[#allocation2 + $0x90] sm:$0xff] 0.0
      %68 = vst [vmem:[#allocation2 + $0x98] sm:$0xff] 0.0
      %69 = vst [vmem:[#allocation2 + $0xa0] sm:$0xff] 0.0
      %70 = vst [vmem:[#allocation2 + $0xa8] sm:$0xff] 0.0
      %71 = vst [vmem:[#allocation2 + $0xb0] sm:$0xff] 0.0
      %72 = vst [vmem:[#allocation2 + $0xb8] sm:$0xff] 0.0
      %73 = vst [vmem:[#allocation2 + $0xc0] sm:$0xff] 0.0
      %74 = vst [vmem:[#allocation2 + $0xc8] sm:$0xff] 0.0
      %75 = vst [vmem:[#allocation2 + $0xd0] sm:$0xff] 0.0
      %76 = vst [vmem:[#allocation2 + $0xd8] sm:$0xff] 0.0
      %77 = vst [vmem:[#allocation2 + $0xe0] sm:$0xff] 0.0
      %78 = vst [vmem:[#allocation2 + $0xe8] sm:$0xff] 0.0
      %79 = vst [vmem:[#allocation2 + $0xf0] sm:$0xff] 0.0
      %80 = vst [vmem:[#allocation2 + $0xf8] sm:$0xff] 0.0
      %81 = vst [vmem:[#allocation2 + $0x100] sm:$0xff] 0.0
      %82 = vst [vmem:[#allocation2 + $0x108] sm:$0xff] 0.0
      %83 = vst [vmem:[#allocation2 + $0x110] sm:$0xff] 0.0
      %84 = vst [vmem:[#allocation2 + $0x118] sm:$0xff] 0.0
      %85 = vst [vmem:[#allocation2 + $0x120] sm:$0xff] 0.0
      %86 = vst [vmem:[#allocation2 + $0x128] sm:$0xff] 0.0
      %87 = vst [vmem:[#allocation2 + $0x130] sm:$0xff] 0.0
      %88 = vst [vmem:[#allocation2 + $0x138] sm:$0xff] 0.0
      %89 = vst [vmem:[#allocation2 + $0x140] sm:$0xff] 0.0
      %90 = vst [vmem:[#allocation2 + $0x148] sm:$0xff] 0.0
      %91 = vst [vmem:[#allocation2 + $0x150] sm:$0xff] 0.0
      %92 = vst [vmem:[#allocation2 + $0x158] sm:$0xff] 0.0
      %93 = vst [vmem:[#allocation2 + $0x160] sm:$0xff] 0.0
      %94 = vst [vmem:[#allocation2 + $0x168] sm:$0xff] 0.0
      %95 = vst [vmem:[#allocation2 + $0x170] sm:$0xff] 0.0
      %96 = vst [vmem:[#allocation2 + $0x178] sm:$0xff] 0.0
      %97 = vst [vmem:[#allocation2 + $0x180] sm:$0xff] 0.0
      %98 = vst [vmem:[#allocation2 + $0x188] sm:$0xff] 0.0
      %99 = vst [vmem:[#allocation2 + $0x190] sm:$0xff] 0.0
      %100 = vst [vmem:[#allocation2 + $0x198] sm:$0xff] 0.0
      %101 = vst [vmem:[#allocation2 + $0x1a0] sm:$0xff] 0.0
      %102 = vst [vmem:[#allocation2 + $0x1a8] sm:$0xff] 0.0
      %103 = vst [vmem:[#allocation2 + $0x1b0] sm:$0xff] 0.0
      %104 = vst [vmem:[#allocation2 + $0x1b8] sm:$0xff] 0.0
      %105 = vst [vmem:[#allocation2 + $0x1c0] sm:$0xff] 0.0
      %106 = vst [vmem:[#allocation2 + $0x1c8] sm:$0xff] 0.0
      %107 = vst [vmem:[#allocation2 + $0x1d0] sm:$0xff] 0.0
      %108 = vst [vmem:[#allocation2 + $0x1d8] sm:$0xff] 0.0
      %109 = vst [vmem:[#allocation2 + $0x1e0] sm:$0xff] 0.0
      %110 = vst [vmem:[#allocation2 + $0x1e8] sm:$0xff] 0.0
      %111 = vst [vmem:[#allocation2 + $0x1f0] sm:$0xff] 0.0
      %112 = vst [vmem:[#allocation2 + $0x1f8] sm:$0xff] 0.0
      %113 = vst [vmem:[#allocation2 + $0x200] sm:$0xff] 0.0
      %114 = vst [vmem:[#allocation2 + $0x208] sm:$0xff] 0.0
      %115 = vst [vmem:[#allocation2 + $0x210] sm:$0xff] 0.0
      %116 = vst [vmem:[#allocation2 + $0x218] sm:$0xff] 0.0
      %117 = vst [vmem:[#allocation2 + $0x220] sm:$0xff] 0.0
      %118 = vst [vmem:[#allocation2 + $0x228] sm:$0xff] 0.0
      %119 = vst [vmem:[#allocation2 + $0x230] sm:$0xff] 0.0
      %120 = vst [vmem:[#allocation2 + $0x238] sm:$0xff] 0.0
      %121 = vst [vmem:[#allocation2 + $0x240] sm:$0xff] 0.0
      %122 = vst [vmem:[#allocation2 + $0x248] sm:$0xff] 0.0
      %123 = vst [vmem:[#allocation2 + $0x250] sm:$0xff] 0.0
      %124 = vst [vmem:[#allocation2 + $0x258] sm:$0xff] 0.0
      %125 = vst [vmem:[#allocation2 + $0x260] sm:$0xff] 0.0
      %126 = vst [vmem:[#allocation2 + $0x268] sm:$0xff] 0.0
      %127 = vst [vmem:[#allocation2 + $0x270] sm:$0xff] 0.0
      %128 = vst [vmem:[#allocation2 + $0x278] sm:$0xff] 0.0
      %129 = vst [vmem:[#allocation2 + $0x280] sm:$0xff] 0.0
      %130 = vst [vmem:[#allocation2 + $0x288] sm:$0xff] 0.0
      %131 = vst [vmem:[#allocation2 + $0x290] sm:$0xff] 0.0
      %132 = vst [vmem:[#allocation2 + $0x298] sm:$0xff] 0.0
      %133 = vst [vmem:[#allocation2 + $0x2a0] sm:$0xff] 0.0
      %134 = vst [vmem:[#allocation2 + $0x2a8] sm:$0xff] 0.0
      %135 = vst [vmem:[#allocation2 + $0x2b0] sm:$0xff] 0.0
      %136 = vst [vmem:[#allocation2 + $0x2b8] sm:$0xff] 0.0
      %137 = vst [vmem:[#allocation2 + $0x2c0] sm:$0xff] 0.0
      %138 = vst [vmem:[#allocation2 + $0x2c8] sm:$0xff] 0.0
      %139 = vst [vmem:[#allocation2 + $0x2d0] sm:$0xff] 0.0
      %140 = vst [vmem:[#allocation2 + $0x2d8] sm:$0xff] 0.0
      %141 = vst [vmem:[#allocation2 + $0x2e0] sm:$0xff] 0.0
      %142 = vst [vmem:[#allocation2 + $0x2e8] sm:$0xff] 0.0
      %143 = vst [vmem:[#allocation2 + $0x2f0] sm:$0xff] 0.0
      %144 = vst [vmem:[#allocation2 + $0x2f8] sm:$0xff] 0.0
      %145 = vst [vmem:[#allocation2 + $0x300] sm:$0xff] 0.0
      %146 = vst [vmem:[#allocation2 + $0x308] sm:$0xff] 0.0
      %147 = vst [vmem:[#allocation2 + $0x310] sm:$0xff] 0.0
      %148 = vst [vmem:[#allocation2 + $0x318] sm:$0xff] 0.0
      %149 = vst [vmem:[#allocation2 + $0x320] sm:$0xff] 0.0
      %150 = vst [vmem:[#allocation2 + $0x328] sm:$0xff] 0.0
      %151 = vst [vmem:[#allocation2 + $0x330] sm:$0xff] 0.0
      %152 = vst [vmem:[#allocation2 + $0x338] sm:$0xff] 0.0
      %153 = vst [vmem:[#allocation2 + $0x340] sm:$0xff] 0.0
      %154 = vst [vmem:[#allocation2 + $0x348] sm:$0xff] 0.0
      %155 = vst [vmem:[#allocation2 + $0x350] sm:$0xff] 0.0
      %156 = vst [vmem:[#allocation2 + $0x358] sm:$0xff] 0.0
      %157 = vst [vmem:[#allocation2 + $0x360] sm:$0xff] 0.0
      %158 = vst [vmem:[#allocation2 + $0x368] sm:$0xff] 0.0
      %159 = vst [vmem:[#allocation2 + $0x370] sm:$0xff] 0.0
      %160 = vst [vmem:[#allocation2 + $0x378] sm:$0xff] 0.0
      %161 = vst [vmem:[#allocation2 + $0x380] sm:$0xff] 0.0
      %162 = vst [vmem:[#allocation2 + $0x388] sm:$0xff] 0.0
      %163 = vst [vmem:[#allocation2 + $0x390] sm:$0xff] 0.0
      %164 = vst [vmem:[#allocation2 + $0x398] sm:$0xff] 0.0
      %165 = vst [vmem:[#allocation2 + $0x3a0] sm:$0xff] 0.0
      %166 = vst [vmem:[#allocation2 + $0x3a8] sm:$0xff] 0.0
      %167 = vst [vmem:[#allocation2 + $0x3b0] sm:$0xff] 0.0
      %168 = vst [vmem:[#allocation2 + $0x3b8] sm:$0xff] 0.0
      %169 = vst [vmem:[#allocation2 + $0x3c0] sm:$0xff] 0.0
      %170 = vst [vmem:[#allocation2 + $0x3c8] sm:$0xff] 0.0
      %171 = vst [vmem:[#allocation2 + $0x3d0] sm:$0xff] 0.0
      %172 = vst [vmem:[#allocation2 + $0x3d8] sm:$0xff] 0.0
      %173 = vst [vmem:[#allocation2 + $0x3e0] sm:$0xff] 0.0
      %174 = vst [vmem:[#allocation2 + $0x3e8] sm:$0xff] 0.0
      %175 = vst [vmem:[#allocation2 + $0x3f0] sm:$0xff] 0.0
      %176 = vst [vmem:[#allocation2 + $0x3f8] sm:$0xff] 0.0
    $region21: #{tpu_custom_call.1} parent=1 // pred_fallthru
      _
    %v177 = vld [vmem:[#allocation2] sm:$0xff]
    %v178 = vld [vmem:[#allocation2 + $0x8] sm:$0xff]
    %v179 = vld [vmem:[#allocation2 + $0x10] sm:$0xff]
    %v180 = vld [vmem:[#allocation2 + $0x18] sm:$0xff]
    %v181 = vld [vmem:[#allocation2 + $0x20] sm:$0xff]
    %v182 = vld [vmem:[#allocation2 + $0x28] sm:$0xff]
    %v183 = vld [vmem:[#allocation2 + $0x30] sm:$0xff]
    %v184 = vld [vmem:[#allocation2 + $0x38] sm:$0xff]
    %v185 = vld [vmem:[#allocation2 + $0x40] sm:$0xff]
    %v186 = vld [vmem:[#allocation2 + $0x48] sm:$0xff]
    %v187 = vld [vmem:[#allocation2 + $0x50] sm:$0xff]
    %v188 = vld [vmem:[#allocation2 + $0x58] sm:$0xff]
    %v189 = vld [vmem:[#allocation2 + $0x60] sm:$0xff]
    %v190 = vld [vmem:[#allocation2 + $0x68] sm:$0xff]
    %v191 = vld [vmem:[#allocation2 + $0x70] sm:$0xff]
    %v192 = vld [vmem:[#allocation2 + $0x78] sm:$0xff]
    %v193 = vld [vmem:[#allocation2 + $0x80] sm:$0xff]
    %v194 = vld [vmem:[#allocation2 + $0x88] sm:$0xff]
    %v195 = vld [vmem:[#allocation2 + $0x90] sm:$0xff]
    %v196 = vld [vmem:[#allocation2 + $0x98] sm:$0xff]
    %v197 = vld [vmem:[#allocation2 + $0xa0] sm:$0xff]
    %v198 = vld [vmem:[#allocation2 + $0xa8] sm:$0xff]
    %v199 = vld [vmem:[#allocation2 + $0xb0] sm:$0xff]
    %v200 = vld [vmem:[#allocation2 + $0xb8] sm:$0xff]
    %v201 = vld [vmem:[#allocation2 + $0xc0] sm:$0xff]
    %v202 = vld [vmem:[#allocation2 + $0xc8] sm:$0xff]
    %v203 = vld [vmem:[#allocation2 + $0xd0] sm:$0xff]
    %v204 = vld [vmem:[#allocation2 + $0xd8] sm:$0xff]
    %v205 = vld [vmem:[#allocation2 + $0xe0] sm:$0xff]
    %v206 = vld [vmem:[#allocation2 + $0xe8] sm:$0xff]
    %v207 = vld [vmem:[#allocation2 + $0xf0] sm:$0xff]
    %v208 = vld [vmem:[#allocation2 + $0xf8] sm:$0xff]
    %v209 = vld [vmem:[#allocation2 + $0x100] sm:$0xff]
    %v210 = vld [vmem:[#allocation2 + $0x108] sm:$0xff]
    %v211 = vld [vmem:[#allocation2 + $0x110] sm:$0xff]
    %v212 = vld [vmem:[#allocation2 + $0x118] sm:$0xff]
    %v213 = vld [vmem:[#allocation2 + $0x120] sm:$0xff]
    %v214 = vld [vmem:[#allocation2 + $0x128] sm:$0xff]
    %v215 = vld [vmem:[#allocation2 + $0x130] sm:$0xff]
    %v216 = vld [vmem:[#allocation2 + $0x138] sm:$0xff]
    %v217 = vld [vmem:[#allocation2 + $0x140] sm:$0xff]
    %v218 = vld [vmem:[#allocation2 + $0x148] sm:$0xff]
    %v219 = vld [vmem:[#allocation2 + $0x150] sm:$0xff]
    %v220 = vld [vmem:[#allocation2 + $0x158] sm:$0xff]
    %v221 = vld [vmem:[#allocation2 + $0x160] sm:$0xff]
    %v222 = vld [vmem:[#allocation2 + $0x168] sm:$0xff]
    %v223 = vld [vmem:[#allocation2 + $0x170] sm:$0xff]
    %v224 = vld [vmem:[#allocation2 + $0x178] sm:$0xff]
    %v225 = vld [vmem:[#allocation2 + $0x180] sm:$0xff]
    %v226 = vld [vmem:[#allocation2 + $0x188] sm:$0xff]
    %v227 = vld [vmem:[#allocation2 + $0x190] sm:$0xff]
    %v228 = vld [vmem:[#allocation2 + $0x198] sm:$0xff]
    %v229 = vld [vmem:[#allocation2 + $0x1a0] sm:$0xff]
    %v230 = vld [vmem:[#allocation2 + $0x1a8] sm:$0xff]
    %v231 = vld [vmem:[#allocation2 + $0x1b0] sm:$0xff]
    %v232 = vld [vmem:[#allocation2 + $0x1b8] sm:$0xff]
    %v233 = vld [vmem:[#allocation2 + $0x1c0] sm:$0xff]
    %v234 = vld [vmem:[#allocation2 + $0x1c8] sm:$0xff]
    %v235 = vld [vmem:[#allocation2 + $0x1d0] sm:$0xff]
    %v236 = vld [vmem:[#allocation2 + $0x1d8] sm:$0xff]
    %v237 = vld [vmem:[#allocation2 + $0x1e0] sm:$0xff]
    %v238 = vld [vmem:[#allocation2 + $0x1e8] sm:$0xff]
    %v239 = vld [vmem:[#allocation2 + $0x1f0] sm:$0xff]
    %v240 = vld [vmem:[#allocation2 + $0x1f8] sm:$0xff]
    %v241 = vld [vmem:[#allocation2 + $0x200] sm:$0xff]
    %v242 = vld [vmem:[#allocation2 + $0x208] sm:$0xff]
    %v243 = vld [vmem:[#allocation2 + $0x210] sm:$0xff]
    %v244 = vld [vmem:[#allocation2 + $0x218] sm:$0xff]
    %v245 = vld [vmem:[#allocation2 + $0x220] sm:$0xff]
    %v246 = vld [vmem:[#allocation2 + $0x228] sm:$0xff]
    %v247 = vld [vmem:[#allocation2 + $0x230] sm:$0xff]
    %v248 = vld [vmem:[#allocation2 + $0x238] sm:$0xff]
    %v249 = vld [vmem:[#allocation2 + $0x240] sm:$0xff]
    %v250 = vld [vmem:[#allocation2 + $0x248] sm:$0xff]
    %v251 = vld [vmem:[#allocation2 + $0x250] sm:$0xff]
    %v252 = vld [vmem:[#allocation2 + $0x258] sm:$0xff]
    %v253 = vld [vmem:[#allocation2 + $0x260] sm:$0xff]
    %v254 = vld [vmem:[#allocation2 + $0x268] sm:$0xff]
    %v255 = vld [vmem:[#allocation2 + $0x270] sm:$0xff]
    %v256 = vld [vmem:[#allocation2 + $0x278] sm:$0xff]
    %v257 = vld [vmem:[#allocation2 + $0x280] sm:$0xff]
    %v258 = vld [vmem:[#allocation2 + $0x288] sm:$0xff]
    %v259 = vld [vmem:[#allocation2 + $0x290] sm:$0xff]
    %v260 = vld [vmem:[#allocation2 + $0x298] sm:$0xff]
    %v261 = vld [vmem:[#allocation2 + $0x2a0] sm:$0xff]
    %v262 = vld [vmem:[#allocation2 + $0x2a8] sm:$0xff]
    %v263 = vld [vmem:[#allocation2 + $0x2b0] sm:$0xff]
    %v264 = vld [vmem:[#allocation2 + $0x2b8] sm:$0xff]
    %v265 = vld [vmem:[#allocation2 + $0x2c0] sm:$0xff]
    %v266 = vld [vmem:[#allocation2 + $0x2c8] sm:$0xff]
    %v267 = vld [vmem:[#allocation2 + $0x2d0] sm:$0xff]
    %v268 = vld [vmem:[#allocation2 + $0x2d8] sm:$0xff]
    %v269 = vld [vmem:[#allocation2 + $0x2e0] sm:$0xff]
    %v270 = vld [vmem:[#allocation2 + $0x2e8] sm:$0xff]
    %v271 = vld [vmem:[#allocation2 + $0x2f0] sm:$0xff]
    %v272 = vld [vmem:[#allocation2 + $0x2f8] sm:$0xff]
    %v273 = vld [vmem:[#allocation2 + $0x300] sm:$0xff]
    %v274 = vld [vmem:[#allocation2 + $0x308] sm:$0xff]
    %v275 = vld [vmem:[#allocation2 + $0x310] sm:$0xff]
    %v276 = vld [vmem:[#allocation2 + $0x318] sm:$0xff]
    %v277 = vld [vmem:[#allocation2 + $0x320] sm:$0xff]
    %v278 = vld [vmem:[#allocation2 + $0x328] sm:$0xff]
    %v279 = vld [vmem:[#allocation2 + $0x330] sm:$0xff]
    %v280 = vld [vmem:[#allocation2 + $0x338] sm:$0xff]
    %v281 = vld [vmem:[#allocation2 + $0x340] sm:$0xff]
    %v282 = vld [vmem:[#allocation2 + $0x348] sm:$0xff]
    %v283 = vld [vmem:[#allocation2 + $0x350] sm:$0xff]
    %v284 = vld [vmem:[#allocation2 + $0x358] sm:$0xff]
    %v285 = vld [vmem:[#allocation2 + $0x360] sm:$0xff]
    %v286 = vld [vmem:[#allocation2 + $0x368] sm:$0xff]
    %v287 = vld [vmem:[#allocation2 + $0x370] sm:$0xff]
    %v288 = vld [vmem:[#allocation2 + $0x378] sm:$0xff]
    %v289 = vld [vmem:[#allocation2 + $0x380] sm:$0xff]
    %v290 = vld [vmem:[#allocation2 + $0x388] sm:$0xff]
    %v291 = vld [vmem:[#allocation2 + $0x390] sm:$0xff]
    %v292 = vld [vmem:[#allocation2 + $0x398] sm:$0xff]
    %v293 = vld [vmem:[#allocation2 + $0x3a0] sm:$0xff]
    %v294 = vld [vmem:[#allocation2 + $0x3a8] sm:$0xff]
    %v295 = vld [vmem:[#allocation2 + $0x3b0] sm:$0xff]
    %v296 = vld [vmem:[#allocation2 + $0x3b8] sm:$0xff]
    %v297 = vld [vmem:[#allocation2 + $0x3c0] sm:$0xff]
    %v298 = vld [vmem:[#allocation2 + $0x3c8] sm:$0xff]
    %v299 = vld [vmem:[#allocation2 + $0x3d0] sm:$0xff]
    %v300 = vld [vmem:[#allocation2 + $0x3d8] sm:$0xff]
    %v301 = vld [vmem:[#allocation2 + $0x3e0] sm:$0xff]
    %v302 = vld [vmem:[#allocation2 + $0x3e8] sm:$0xff]
    %v303 = vld [vmem:[#allocation2 + $0x3f0] sm:$0xff]
    %v304 = vld [vmem:[#allocation2 + $0x3f8] sm:$0xff]
    %v305 = vld [vmem:[#allocation3] sm:$0xf]
    %v306 = vld [vmem:[#allocation3 + $0x4] sm:$0xf]
    %v307 = vld [vmem:[#allocation3 + $0x8] sm:$0xf]
    %v308 = vld [vmem:[#allocation3 + $0xc] sm:$0xf]
    %v309 = vld [vmem:[#allocation3 + $0x10] sm:$0xf]
    %v310 = vld [vmem:[#allocation3 + $0x14] sm:$0xf]
    %v311 = vld [vmem:[#allocation3 + $0x18] sm:$0xf]
    %v312 = vld [vmem:[#allocation3 + $0x1c] sm:$0xf]
    %v313 = vld [vmem:[#allocation3 + $0x20] sm:$0xf]
    %v314 = vld [vmem:[#allocation3 + $0x24] sm:$0xf]
    %v315 = vld [vmem:[#allocation3 + $0x28] sm:$0xf]
    %v316 = vld [vmem:[#allocation3 + $0x2c] sm:$0xf]
    %v317 = vld [vmem:[#allocation3 + $0x30] sm:$0xf]
    %v318 = vld [vmem:[#allocation3 + $0x34] sm:$0xf]
    %v319 = vld [vmem:[#allocation3 + $0x38] sm:$0xf]
    %v320 = vld [vmem:[#allocation3 + $0x3c] sm:$0xf]
    %v321 = vld [vmem:[#allocation3 + $0x40] sm:$0xf]
    %v322 = vld [vmem:[#allocation3 + $0x44] sm:$0xf]
    %v323 = vld [vmem:[#allocation3 + $0x48] sm:$0xf]
    %v324 = vld [vmem:[#allocation3 + $0x4c] sm:$0xf]
    %v325 = vld [vmem:[#allocation3 + $0x50] sm:$0xf]
    %v326 = vld [vmem:[#allocation3 + $0x54] sm:$0xf]
    %v327 = vld [vmem:[#allocation3 + $0x58] sm:$0xf]
    %v328 = vld [vmem:[#allocation3 + $0x5c] sm:$0xf]
    %v329 = vld [vmem:[#allocation3 + $0x60] sm:$0xf]
    %v330 = vld [vmem:[#allocation3 + $0x64] sm:$0xf]
    %v331 = vld [vmem:[#allocation3 + $0x68] sm:$0xf]
    %v332 = vld [vmem:[#allocation3 + $0x6c] sm:$0xf]
    %v333 = vld [vmem:[#allocation3 + $0x70] sm:$0xf]
    %v334 = vld [vmem:[#allocation3 + $0x74] sm:$0xf]
    %v335 = vld [vmem:[#allocation3 + $0x78] sm:$0xf]
    %v336 = vld [vmem:[#allocation3 + $0x7c] sm:$0xf]
    %v337 = vld [vmem:[#allocation3 + $0x80] sm:$0xf]
    %v338 = vld [vmem:[#allocation3 + $0x84] sm:$0xf]
    %v339 = vld [vmem:[#allocation3 + $0x88] sm:$0xf]
    %v340 = vld [vmem:[#allocation3 + $0x8c] sm:$0xf]
    %v341 = vld [vmem:[#allocation3 + $0x90] sm:$0xf]
    %v342 = vld [vmem:[#allocation3 + $0x94] sm:$0xf]
    %v343 = vld [vmem:[#allocation3 + $0x98] sm:$0xf]
    %v344 = vld [vmem:[#allocation3 + $0x9c] sm:$0xf]
    %v345 = vld [vmem:[#allocation3 + $0xa0] sm:$0xf]
    %v346 = vld [vmem:[#allocation3 + $0xa4] sm:$0xf]
    %v347 = vld [vmem:[#allocation3 + $0xa8] sm:$0xf]
    %v348 = vld [vmem:[#allocation3 + $0xac] sm:$0xf]
    %v349 = vld [vmem:[#allocation3 + $0xb0] sm:$0xf]
    %v350 = vld [vmem:[#allocation3 + $0xb4] sm:$0xf]
    %v351 = vld [vmem:[#allocation3 + $0xb8] sm:$0xf]
    %v352 = vld [vmem:[#allocation3 + $0xbc] sm:$0xf]
    %v353 = vld [vmem:[#allocation3 + $0xc0] sm:$0xf]
    %v354 = vld [vmem:[#allocation3 + $0xc4] sm:$0xf]
    %v355 = vld [vmem:[#allocation3 + $0xc8] sm:$0xf]
    %v356 = vld [vmem:[#allocation3 + $0xcc] sm:$0xf]
    %v357 = vld [vmem:[#allocation3 + $0xd0] sm:$0xf]
    %v358 = vld [vmem:[#allocation3 + $0xd4] sm:$0xf]
    %v359 = vld [vmem:[#allocation3 + $0xd8] sm:$0xf]
    %v360 = vld [vmem:[#allocation3 + $0xdc] sm:$0xf]
    %v361 = vld [vmem:[#allocation3 + $0xe0] sm:$0xf]
    %v362 = vld [vmem:[#allocation3 + $0xe4] sm:$0xf]
    %v363 = vld [vmem:[#allocation3 + $0xe8] sm:$0xf]
    %v364 = vld [vmem:[#allocation3 + $0xec] sm:$0xf]
    %v365 = vld [vmem:[#allocation3 + $0xf0] sm:$0xf]
    %v366 = vld [vmem:[#allocation3 + $0xf4] sm:$0xf]
    %v367 = vld [vmem:[#allocation3 + $0xf8] sm:$0xf]
    %v368 = vld [vmem:[#allocation3 + $0xfc] sm:$0xf]
    %v369 = vld [vmem:[#allocation6] sm:$0xff]
    %v370 = vld [vmem:[#allocation6 + $0x8] sm:$0xff]
    %v371 = vld [vmem:[#allocation6 + $0x10] sm:$0xff]
    %v372 = vld [vmem:[#allocation6 + $0x18] sm:$0xff]
    %v373 = vld [vmem:[#allocation6 + $0x20] sm:$0xff]
    %v374 = vld [vmem:[#allocation6 + $0x28] sm:$0xff]
    %v375 = vld [vmem:[#allocation6 + $0x30] sm:$0xff]
    %v376 = vld [vmem:[#allocation6 + $0x38] sm:$0xff]
    %v377 = vld [vmem:[#allocation6 + $0x40] sm:$0xff]
    %v378 = vld [vmem:[#allocation6 + $0x48] sm:$0xff]
    %v379 = vld [vmem:[#allocation6 + $0x50] sm:$0xff]
    %v380 = vld [vmem:[#allocation6 + $0x58] sm:$0xff]
    %v381 = vld [vmem:[#allocation6 + $0x60] sm:$0xff]
    %v382 = vld [vmem:[#allocation6 + $0x68] sm:$0xff]
    %v383 = vld [vmem:[#allocation6 + $0x70] sm:$0xff]
    %v384 = vld [vmem:[#allocation6 + $0x78] sm:$0xff]
    %v449 = vunpack.c.l.b16 %v305
    %v450 = vunpack.c.l.b16 %v306
    %v451 = vunpack.c.l.b16 %v307
    %v452 = vunpack.c.l.b16 %v308
    %v453 = vunpack.c.l.b16 %v309
    %v454 = vunpack.c.l.b16 %v310
    %v455 = vunpack.c.l.b16 %v311
    %v456 = vunpack.c.l.b16 %v312
    %v457 = vunpack.c.l.b16 %v313
    %v458 = vunpack.c.l.b16 %v314
    %v459 = vunpack.c.l.b16 %v315
    %v460 = vunpack.c.l.b16 %v316
    %v461 = vunpack.c.l.b16 %v317
    %v462 = vunpack.c.l.b16 %v318
    %v463 = vunpack.c.l.b16 %v319
    %v464 = vunpack.c.l.b16 %v320
    %v465 = vunpack.c.l.b16 %v321
    %v466 = vunpack.c.l.b16 %v322
    %v467 = vunpack.c.l.b16 %v323
    %v468 = vunpack.c.l.b16 %v324
    %v469 = vunpack.c.l.b16 %v325
    %v470 = vunpack.c.l.b16 %v326
    %v471 = vunpack.c.l.b16 %v327
    %v472 = vunpack.c.l.b16 %v328
    %v473 = vunpack.c.l.b16 %v329
    %v474 = vunpack.c.l.b16 %v330
    %v475 = vunpack.c.l.b16 %v331
    %v476 = vunpack.c.l.b16 %v332
    %v477 = vunpack.c.l.b16 %v333
    %v478 = vunpack.c.l.b16 %v334
    %v479 = vunpack.c.l.b16 %v335
    %v480 = vunpack.c.l.b16 %v336
    %v481 = vunpack.c.l.b16 %v337
    %v482 = vunpack.c.l.b16 %v338
    %v483 = vunpack.c.l.b16 %v339
    %v484 = vunpack.c.l.b16 %v340
    %v485 = vunpack.c.l.b16 %v341
    %v486 = vunpack.c.l.b16 %v342
    %v487 = vunpack.c.l.b16 %v343
    %v488 = vunpack.c.l.b16 %v344
    %v489 = vunpack.c.l.b16 %v345
    %v490 = vunpack.c.l.b16 %v346
    %v491 = vunpack.c.l.b16 %v347
    %v492 = vunpack.c.l.b16 %v348
    %v493 = vunpack.c.l.b16 %v349
    %v494 = vunpack.c.l.b16 %v350
    %v495 = vunpack.c.l.b16 %v351
    %v496 = vunpack.c.l.b16 %v352
    %v497 = vunpack.c.l.b16 %v353
    %v498 = vunpack.c.l.b16 %v354
    %v499 = vunpack.c.l.b16 %v355
    %v500 = vunpack.c.l.b16 %v356
    %v501 = vunpack.c.l.b16 %v357
    %v502 = vunpack.c.l.b16 %v358
    %v503 = vunpack.c.l.b16 %v359
    %v504 = vunpack.c.l.b16 %v360
    %v505 = vunpack.c.l.b16 %v361
    %v506 = vunpack.c.l.b16 %v362
    %v507 = vunpack.c.l.b16 %v363
    %v508 = vunpack.c.l.b16 %v364
    %v509 = vunpack.c.l.b16 %v365
    %v510 = vunpack.c.l.b16 %v366
    %v511 = vunpack.c.l.b16 %v367
    %v512 = vunpack.c.l.b16 %v368
    %v513 = vpack.c.b16 %v450, %v449
    %v514 = vpack.c.b16 %v452, %v451
    %v515 = vpack.c.b16 %v454, %v453
    %v516 = vpack.c.b16 %v456, %v455
    %v517 = vpack.c.b16 %v458, %v457
    %v518 = vpack.c.b16 %v460, %v459
    %v519 = vpack.c.b16 %v462, %v461
    %v520 = vpack.c.b16 %v464, %v463
    %v521 = vpack.c.b16 %v466, %v465
    %v522 = vpack.c.b16 %v468, %v467
    %v523 = vpack.c.b16 %v470, %v469
    %v524 = vpack.c.b16 %v472, %v471
    %v525 = vpack.c.b16 %v474, %v473
    %v526 = vpack.c.b16 %v476, %v475
    %v527 = vpack.c.b16 %v478, %v477
    %v528 = vpack.c.b16 %v480, %v479
    %v529 = vpack.c.b16 %v482, %v481
    %v530 = vpack.c.b16 %v484, %v483
    %v531 = vpack.c.b16 %v486, %v485
    %v532 = vpack.c.b16 %v488, %v487
    %v533 = vpack.c.b16 %v490, %v489
    %v534 = vpack.c.b16 %v492, %v491
    %v535 = vpack.c.b16 %v494, %v493
    %v536 = vpack.c.b16 %v496, %v495
    %v537 = vpack.c.b16 %v498, %v497
    %v538 = vpack.c.b16 %v500, %v499
    %v539 = vpack.c.b16 %v502, %v501
    %v540 = vpack.c.b16 %v504, %v503
    %v541 = vpack.c.b16 %v506, %v505
    %v542 = vpack.c.b16 %v508, %v507
    %v543 = vpack.c.b16 %v510, %v509
    %v544 = vpack.c.b16 %v512, %v511
    %v593 = vunpack.c.l.b16 %v369
    %v594 = vunpack.c.h.b16 %v369
    %v595 = vunpack.c.l.b16 %v370
    %v596 = vunpack.c.h.b16 %v370
    %v597 = vunpack.c.l.b16 %v371
    %v598 = vunpack.c.h.b16 %v371
    %v599 = vunpack.c.l.b16 %v372
    %v600 = vunpack.c.h.b16 %v372
    %v601 = vunpack.c.l.b16 %v373
    %v602 = vunpack.c.h.b16 %v373
    %v603 = vunpack.c.l.b16 %v374
    %v604 = vunpack.c.h.b16 %v374
    %v605 = vunpack.c.l.b16 %v375
    %v606 = vunpack.c.h.b16 %v375
    %v607 = vunpack.c.l.b16 %v376
    %v608 = vunpack.c.h.b16 %v376
    %v609 = vunpack.c.l.b16 %v377
    %v610 = vunpack.c.h.b16 %v377
    %v611 = vunpack.c.l.b16 %v378
    %v612 = vunpack.c.h.b16 %v378
    %v613 = vunpack.c.l.b16 %v379
    %v614 = vunpack.c.h.b16 %v379
    %v615 = vunpack.c.l.b16 %v380
    %v616 = vunpack.c.h.b16 %v380
    %v617 = vunpack.c.l.b16 %v381
    %v618 = vunpack.c.h.b16 %v381
    %v619 = vunpack.c.l.b16 %v382
    %v620 = vunpack.c.h.b16 %v382
    %v621 = vunpack.c.l.b16 %v383
    %v622 = vunpack.c.h.b16 %v383
    %v623 = vunpack.c.l.b16 %v384
    %v624 = vunpack.c.h.b16 %v384
    %v625 = vpack.c.b16 %v595, %v593
    %v626 = vpack.c.b16 %v596, %v594
    %v627 = vpack.c.b16 %v599, %v597
    %v628 = vpack.c.b16 %v600, %v598
    %v629 = vpack.c.b16 %v603, %v601
    %v630 = vpack.c.b16 %v604, %v602
    %v631 = vpack.c.b16 %v607, %v605
    %v632 = vpack.c.b16 %v608, %v606
    %v633 = vpack.c.b16 %v611, %v609
    %v634 = vpack.c.b16 %v612, %v610
    %v635 = vpack.c.b16 %v615, %v613
    %v636 = vpack.c.b16 %v616, %v614
    %v637 = vpack.c.b16 %v619, %v617
    %v638 = vpack.c.b16 %v620, %v618
    %v639 = vpack.c.b16 %v623, %v621
    %v640 = vpack.c.b16 %v624, %v622
    %657 = vmatprep.subr.bf16.mxu0 %v626
    %658 = vmatpush1.bf16.msra.mxu0 %v625
    %659 = vmatprep.subr.bf16.mxu0 %v628
    %660 = vmatpush1.bf16.msra.mxu0 %v627
    %661 = vmatprep.subr.bf16.mxu0 %v630
    %662 = vmatpush1.bf16.msra.mxu0 %v629
    %663 = vmatprep.subr.bf16.mxu0 %v632
    %664 = vmatpush1.bf16.msra.mxu0 %v631
    %665 = vmatprep.subr.bf16.mxu0 %v634
    %666 = vmatpush1.bf16.msra.mxu0 %v633
    %667 = vmatprep.subr.bf16.mxu0 %v636
    %668 = vmatpush1.bf16.msra.mxu0 %v635
    %669 = vmatprep.subr.bf16.mxu0 %v638
    %670 = vmatpush1.bf16.msra.mxu0 %v637
    %671 = vmatprep.subr.bf16.mxu0 %v640
    %672 = vmatpush1.bf16.msra.mxu0 %v639
    %673 = vmatprep.subr.bf16.mxu0 0
    %674 = vmatpush1.bf16.msra.mxu0 0
    %675 = vmatprep.subr.bf16.mxu0 0
    %676 = vmatpush1.bf16.msra.mxu0 0
    %677 = vmatprep.subr.bf16.mxu0 0
    %678 = vmatpush1.bf16.msra.mxu0 0
    %679 = vmatprep.subr.bf16.mxu0 0
    %680 = vmatpush1.bf16.msra.mxu0 0
    %681 = vmatprep.subr.bf16.mxu0 0
    %682 = vmatpush1.bf16.msra.mxu0 0
    %683 = vmatprep.subr.bf16.mxu0 0
    %684 = vmatpush1.bf16.msra.mxu0 0
    %685 = vmatprep.subr.bf16.mxu0 0
    %686 = vmatpush1.bf16.msra.mxu0 0
    %687 = vmatprep.subr.bf16.mxu0 0
    %688 = vmatpush1.bf16.msra.mxu0 0
    %689 = vmatprep.mubr.bf16.mxu0 0
    %690 = vmatmul.mubr.bf16.gmra.mrb[0].mxu0 %v513
    %v691 = vpop.f32.mrb[0].mxu0
    %v692 = vadd.f32 0.0, %v691
    %v693 = vpop.f32.mrb[0].mxu0
    %v694 = vadd.f32 0.0, %v693
    %v695 = vpop.f32.mrb[0].mxu0
    %v696 = vadd.f32 0.0, %v695
    %v697 = vpop.f32.mrb[0].mxu0
    %v698 = vadd.f32 0.0, %v697
    %699 = vmatprep.mubr.bf16.mxu0 0
    %700 = vmatmul.mubr.bf16.gmra.mrb[0].mxu0 %v514
    %v701 = vpop.f32.mrb[0].mxu0
    %v702 = vadd.f32 0.0, %v701
    %v703 = vpop.f32.mrb[0].mxu0
    %v704 = vadd.f32 0.0, %v703
    %v705 = vpop.f32.mrb[0].mxu0
    %v706 = vadd.f32 0.0, %v705
    %v707 = vpop.f32.mrb[0].mxu0
    %v708 = vadd.f32 0.0, %v707
    %709 = vmatprep.mubr.bf16.mxu0 0
    %710 = vmatmul.mubr.bf16.gmra.mrb[0].mxu0 %v515
    %v711 = vpop.f32.mrb[0].mxu0
    %v712 = vadd.f32 0.0, %v711
    %v713 = vpop.f32.mrb[0].mxu0
    %v714 = vadd.f32 0.0, %v713
    %v715 = vpop.f32.mrb[0].mxu0
    %v716 = vadd.f32 0.0, %v715
    %v717 = vpop.f32.mrb[0].mxu0
    %v718 = vadd.f32 0.0, %v717
    %719 = vmatprep.mubr.bf16.mxu0 0
    %720 = vmatmul.mubr.bf16.gmra.mrb[0].mxu0 %v516
    %v721 = vpop.f32.mrb[0].mxu0
    %v722 = vadd.f32 0.0, %v721
    %v723 = vpop.f32.mrb[0].mxu0
    %v724 = vadd.f32 0.0, %v723
    %v725 = vpop.f32.mrb[0].mxu0
    %v726 = vadd.f32 0.0, %v725
    %v727 = vpop.f32.mrb[0].mxu0
    %v728 = vadd.f32 0.0, %v727
    %729 = vmatprep.mubr.bf16.mxu0 0
    %730 = vmatmul.mubr.bf16.gmra.mrb[0].mxu0 %v517
    %v731 = vpop.f32.mrb[0].mxu0
    %v732 = vadd.f32 0.0, %v731
    %v733 = vpop.f32.mrb[0].mxu0
    %v734 = vadd.f32 0.0, %v733
    %v735 = vpop.f32.mrb[0].mxu0
    %v736 = vadd.f32 0.0, %v735
    %v737 = vpop.f32.mrb[0].mxu0
    %v738 = vadd.f32 0.0, %v737
    %739 = vmatprep.mubr.bf16.mxu0 0
    %740 = vmatmul.mubr.bf16.gmra.mrb[0].mxu0 %v518
    %v741 = vpop.f32.mrb[0].mxu0
    %v742 = vadd.f32 0.0, %v741
    %v743 = vpop.f32.mrb[0].mxu0
    %v744 = vadd.f32 0.0, %v743
    %v745 = vpop.f32.mrb[0].mxu0
    %v746 = vadd.f32 0.0, %v745
    %v747 = vpop.f32.mrb[0].mxu0
    %v748 = vadd.f32 0.0, %v747
    %749 = vmatprep.mubr.bf16.mxu0 0
    %750 = vmatmul.mubr.bf16.gmra.mrb[0].mxu0 %v519
    %v751 = vpop.f32.mrb[0].mxu0
    %v752 = vadd.f32 0.0, %v751
    %v753 = vpop.f32.mrb[0].mxu0
    %v754 = vadd.f32 0.0, %v753
    %v755 = vpop.f32.mrb[0].mxu0
    %v756 = vadd.f32 0.0, %v755
    %v757 = vpop.f32.mrb[0].mxu0
    %v758 = vadd.f32 0.0, %v757
    %759 = vmatprep.mubr.bf16.mxu0 0
    %760 = vmatmul.mubr.bf16.gmra.mrb[0].mxu0 %v520
    %v761 = vpop.f32.mrb[0].mxu0
    %v762 = vadd.f32 0.0, %v761
    %v763 = vpop.f32.mrb[0].mxu0
    %v764 = vadd.f32 0.0, %v763
    %v765 = vpop.f32.mrb[0].mxu0
    %v766 = vadd.f32 0.0, %v765
    %v767 = vpop.f32.mrb[0].mxu0
    %v768 = vadd.f32 0.0, %v767
    %769 = vmatprep.mubr.bf16.mxu0 0
    %770 = vmatmul.mubr.bf16.gmra.mrb[0].mxu0 %v521
    %v771 = vpop.f32.mrb[0].mxu0
    %v772 = vadd.f32 0.0, %v771
    %v773 = vpop.f32.mrb[0].mxu0
    %v774 = vadd.f32 0.0, %v773
    %v775 = vpop.f32.mrb[0].mxu0
    %v776 = vadd.f32 0.0, %v775
    %v777 = vpop.f32.mrb[0].mxu0
    %v778 = vadd.f32 0.0, %v777
    %779 = vmatprep.mubr.bf16.mxu0 0
    %780 = vmatmul.mubr.bf16.gmra.mrb[0].mxu0 %v522
    %v781 = vpop.f32.mrb[0].mxu0
    %v782 = vadd.f32 0.0, %v781
    %v783 = vpop.f32.mrb[0].mxu0
    %v784 = vadd.f32 0.0, %v783
    %v785 = vpop.f32.mrb[0].mxu0
    %v786 = vadd.f32 0.0, %v785
    %v787 = vpop.f32.mrb[0].mxu0
    %v788 = vadd.f32 0.0, %v787
    %789 = vmatprep.mubr.bf16.mxu0 0
    %790 = vmatmul.mubr.bf16.gmra.mrb[0].mxu0 %v523
    %v791 = vpop.f32.mrb[0].mxu0
    %v792 = vadd.f32 0.0, %v791
    %v793 = vpop.f32.mrb[0].mxu0
    %v794 = vadd.f32 0.0, %v793
    %v795 = vpop.f32.mrb[0].mxu0
    %v796 = vadd.f32 0.0, %v795
    %v797 = vpop.f32.mrb[0].mxu0
    %v798 = vadd.f32 0.0, %v797
    %799 = vmatprep.mubr.bf16.mxu0 0
    %800 = vmatmul.mubr.bf16.gmra.mrb[0].mxu0 %v524
    %v801 = vpop.f32.mrb[0].mxu0
    %v802 = vadd.f32 0.0, %v801
    %v803 = vpop.f32.mrb[0].mxu0
    %v804 = vadd.f32 0.0, %v803
    %v805 = vpop.f32.mrb[0].mxu0
    %v806 = vadd.f32 0.0, %v805
    %v807 = vpop.f32.mrb[0].mxu0
    %v808 = vadd.f32 0.0, %v807
    %809 = vmatprep.mubr.bf16.mxu0 0
    %810 = vmatmul.mubr.bf16.gmra.mrb[0].mxu0 %v525
    %v811 = vpop.f32.mrb[0].mxu0
    %v812 = vadd.f32 0.0, %v811
    %v813 = vpop.f32.mrb[0].mxu0
    %v814 = vadd.f32 0.0, %v813
    %v815 = vpop.f32.mrb[0].mxu0
    %v816 = vadd.f32 0.0, %v815
    %v817 = vpop.f32.mrb[0].mxu0
    %v818 = vadd.f32 0.0, %v817
    %819 = vmatprep.mubr.bf16.mxu0 0
    %820 = vmatmul.mubr.bf16.gmra.mrb[0].mxu0 %v526
    %v821 = vpop.f32.mrb[0].mxu0
    %v822 = vadd.f32 0.0, %v821
    %v823 = vpop.f32.mrb[0].mxu0
    %v824 = vadd.f32 0.0, %v823
    %v825 = vpop.f32.mrb[0].mxu0
    %v826 = vadd.f32 0.0, %v825
    %v827 = vpop.f32.mrb[0].mxu0
    %v828 = vadd.f32 0.0, %v827
    %829 = vmatprep.mubr.bf16.mxu0 0
    %830 = vmatmul.mubr.bf16.gmra.mrb[0].mxu0 %v527
    %v831 = vpop.f32.mrb[0].mxu0
    %v832 = vadd.f32 0.0, %v831
    %v833 = vpop.f32.mrb[0].mxu0
    %v834 = vadd.f32 0.0, %v833
    %v835 = vpop.f32.mrb[0].mxu0
    %v836 = vadd.f32 0.0, %v835
    %v837 = vpop.f32.mrb[0].mxu0
    %v838 = vadd.f32 0.0, %v837
    %839 = vmatprep.mubr.bf16.mxu0 0
    %840 = vmatmul.mubr.bf16.gmra.mrb[0].mxu0 %v528
    %v841 = vpop.f32.mrb[0].mxu0
    %v842 = vadd.f32 0.0, %v841
    %v843 = vpop.f32.mrb[0].mxu0
    %v844 = vadd.f32 0.0, %v843
    %v845 = vpop.f32.mrb[0].mxu0
    %v846 = vadd.f32 0.0, %v845
    %v847 = vpop.f32.mrb[0].mxu0
    %v848 = vadd.f32 0.0, %v847
    %849 = vmatprep.mubr.bf16.mxu0 0
    %850 = vmatmul.mubr.bf16.gmra.mrb[0].mxu0 %v529
    %v851 = vpop.f32.mrb[0].mxu0
    %v852 = vadd.f32 0.0, %v851
    %v853 = vpop.f32.mrb[0].mxu0
    %v854 = vadd.f32 0.0, %v853
    %v855 = vpop.f32.mrb[0].mxu0
    %v856 = vadd.f32 0.0, %v855
    %v857 = vpop.f32.mrb[0].mxu0
    %v858 = vadd.f32 0.0, %v857
    %859 = vmatprep.mubr.bf16.mxu0 0
    %860 = vmatmul.mubr.bf16.gmra.mrb[0].mxu0 %v530
    %v861 = vpop.f32.mrb[0].mxu0
    %v862 = vadd.f32 0.0, %v861
    %v863 = vpop.f32.mrb[0].mxu0
    %v864 = vadd.f32 0.0, %v863
    %v865 = vpop.f32.mrb[0].mxu0
    %v866 = vadd.f32 0.0, %v865
    %v867 = vpop.f32.mrb[0].mxu0
    %v868 = vadd.f32 0.0, %v867
    %869 = vmatprep.mubr.bf16.mxu0 0
    %870 = vmatmul.mubr.bf16.gmra.mrb[0].mxu0 %v531
    %v871 = vpop.f32.mrb[0].mxu0
    %v872 = vadd.f32 0.0, %v871
    %v873 = vpop.f32.mrb[0].mxu0
    %v874 = vadd.f32 0.0, %v873
    %v875 = vpop.f32.mrb[0].mxu0
    %v876 = vadd.f32 0.0, %v875
    %v877 = vpop.f32.mrb[0].mxu0
    %v878 = vadd.f32 0.0, %v877
    %879 = vmatprep.mubr.bf16.mxu0 0
    %880 = vmatmul.mubr.bf16.gmra.mrb[0].mxu0 %v532
    %v881 = vpop.f32.mrb[0].mxu0
    %v882 = vadd.f32 0.0, %v881
    %v883 = vpop.f32.mrb[0].mxu0
    %v884 = vadd.f32 0.0, %v883
    %v885 = vpop.f32.mrb[0].mxu0
    %v886 = vadd.f32 0.0, %v885
    %v887 = vpop.f32.mrb[0].mxu0
    %v888 = vadd.f32 0.0, %v887
    %889 = vmatprep.mubr.bf16.mxu0 0
    %890 = vmatmul.mubr.bf16.gmra.mrb[0].mxu0 %v533
    %v891 = vpop.f32.mrb[0].mxu0
    %v892 = vadd.f32 0.0, %v891
    %v893 = vpop.f32.mrb[0].mxu0
    %v894 = vadd.f32 0.0, %v893
    %v895 = vpop.f32.mrb[0].mxu0
    %v896 = vadd.f32 0.0, %v895
    %v897 = vpop.f32.mrb[0].mxu0
    %v898 = vadd.f32 0.0, %v897
    %899 = vmatprep.mubr.bf16.mxu0 0
    %900 = vmatmul.mubr.bf16.gmra.mrb[0].mxu0 %v534
    %v901 = vpop.f32.mrb[0].mxu0
    %v902 = vadd.f32 0.0, %v901
    %v903 = vpop.f32.mrb[0].mxu0
    %v904 = vadd.f32 0.0, %v903
    %v905 = vpop.f32.mrb[0].mxu0
    %v906 = vadd.f32 0.0, %v905
    %v907 = vpop.f32.mrb[0].mxu0
    %v908 = vadd.f32 0.0, %v907
    %909 = vmatprep.mubr.bf16.mxu0 0
    %910 = vmatmul.mubr.bf16.gmra.mrb[0].mxu0 %v535
    %v911 = vpop.f32.mrb[0].mxu0
    %v912 = vadd.f32 0.0, %v911
    %v913 = vpop.f32.mrb[0].mxu0
    %v914 = vadd.f32 0.0, %v913
    %v915 = vpop.f32.mrb[0].mxu0
    %v916 = vadd.f32 0.0, %v915
    %v917 = vpop.f32.mrb[0].mxu0
    %v918 = vadd.f32 0.0, %v917
    %919 = vmatprep.mubr.bf16.mxu0 0
    %920 = vmatmul.mubr.bf16.gmra.mrb[0].mxu0 %v536
    %v921 = vpop.f32.mrb[0].mxu0
    %v922 = vadd.f32 0.0, %v921
    %v923 = vpop.f32.mrb[0].mxu0
    %v924 = vadd.f32 0.0, %v923
    %v925 = vpop.f32.mrb[0].mxu0
    %v926 = vadd.f32 0.0, %v925
    %v927 = vpop.f32.mrb[0].mxu0
    %v928 = vadd.f32 0.0, %v927
    %929 = vmatprep.mubr.bf16.mxu0 0
    %930 = vmatmul.mubr.bf16.gmra.mrb[0].mxu0 %v537
    %v931 = vpop.f32.mrb[0].mxu0
    %v932 = vadd.f32 0.0, %v931
    %v933 = vpop.f32.mrb[0].mxu0
    %v934 = vadd.f32 0.0, %v933
    %v935 = vpop.f32.mrb[0].mxu0
    %v936 = vadd.f32 0.0, %v935
    %v937 = vpop.f32.mrb[0].mxu0
    %v938 = vadd.f32 0.0, %v937
    %939 = vmatprep.mubr.bf16.mxu0 0
    %940 = vmatmul.mubr.bf16.gmra.mrb[0].mxu0 %v538
    %v941 = vpop.f32.mrb[0].mxu0
    %v942 = vadd.f32 0.0, %v941
    %v943 = vpop.f32.mrb[0].mxu0
    %v944 = vadd.f32 0.0, %v943
    %v945 = vpop.f32.mrb[0].mxu0
    %v946 = vadd.f32 0.0, %v945
    %v947 = vpop.f32.mrb[0].mxu0
    %v948 = vadd.f32 0.0, %v947
    %949 = vmatprep.mubr.bf16.mxu0 0
    %950 = vmatmul.mubr.bf16.gmra.mrb[0].mxu0 %v539
    %v951 = vpop.f32.mrb[0].mxu0
    %v952 = vadd.f32 0.0, %v951
    %v953 = vpop.f32.mrb[0].mxu0
    %v954 = vadd.f32 0.0, %v953
    %v955 = vpop.f32.mrb[0].mxu0
    %v956 = vadd.f32 0.0, %v955
    %v957 = vpop.f32.mrb[0].mxu0
    %v958 = vadd.f32 0.0, %v957
    %959 = vmatprep.mubr.bf16.mxu0 0
    %960 = vmatmul.mubr.bf16.gmra.mrb[0].mxu0 %v540
    %v961 = vpop.f32.mrb[0].mxu0
    %v962 = vadd.f32 0.0, %v961
    %v963 = vpop.f32.mrb[0].mxu0
    %v964 = vadd.f32 0.0, %v963
    %v965 = vpop.f32.mrb[0].mxu0
    %v966 = vadd.f32 0.0, %v965
    %v967 = vpop.f32.mrb[0].mxu0
    %v968 = vadd.f32 0.0, %v967
    %969 = vmatprep.mubr.bf16.mxu0 0
    %970 = vmatmul.mubr.bf16.gmra.mrb[0].mxu0 %v541
    %v971 = vpop.f32.mrb[0].mxu0
    %v972 = vadd.f32 0.0, %v971
    %v973 = vpop.f32.mrb[0].mxu0
    %v974 = vadd.f32 0.0, %v973
    %v975 = vpop.f32.mrb[0].mxu0
    %v976 = vadd.f32 0.0, %v975
    %v977 = vpop.f32.mrb[0].mxu0
    %v978 = vadd.f32 0.0, %v977
    %979 = vmatprep.mubr.bf16.mxu0 0
    %980 = vmatmul.mubr.bf16.gmra.mrb[0].mxu0 %v542
    %v981 = vpop.f32.mrb[0].mxu0
    %v982 = vadd.f32 0.0, %v981
    %v983 = vpop.f32.mrb[0].mxu0
    %v984 = vadd.f32 0.0, %v983
    %v985 = vpop.f32.mrb[0].mxu0
    %v986 = vadd.f32 0.0, %v985
    %v987 = vpop.f32.mrb[0].mxu0
    %v988 = vadd.f32 0.0, %v987
    %989 = vmatprep.mubr.bf16.mxu0 0
    %990 = vmatmul.mubr.bf16.gmra.mrb[0].mxu0 %v543
    %v991 = vpop.f32.mrb[0].mxu0
    %v992 = vadd.f32 0.0, %v991
    %v993 = vpop.f32.mrb[0].mxu0
    %v994 = vadd.f32 0.0, %v993
    %v995 = vpop.f32.mrb[0].mxu0
    %v996 = vadd.f32 0.0, %v995
    %v997 = vpop.f32.mrb[0].mxu0
    %v998 = vadd.f32 0.0, %v997
    %999 = vmatprep.mubr.bf16.mxu0 0
    %1000 = vmatmul.mubr.bf16.gmra.mrb[0].mxu0 %v544
    %v1001 = vpop.f32.mrb[0].mxu0
    %v1002 = vadd.f32 0.0, %v1001
    %v1003 = vpop.f32.mrb[0].mxu0
    %v1004 = vadd.f32 0.0, %v1003
    %v1005 = vpop.f32.mrb[0].mxu0
    %v1006 = vadd.f32 0.0, %v1005
    %v1007 = vpop.f32.mrb[0].mxu0
    %v1008 = vadd.f32 0.0, %v1007
    %1009 = vdwg.mxu0
    %v1010 = vadd.f32 %v177, %v692
    %v1011 = vadd.f32 %v178, %v694
    %v1012 = vadd.f32 %v179, %v696
    %v1013 = vadd.f32 %v180, %v698
    %v1014 = vadd.f32 %v181, %v702
    %v1015 = vadd.f32 %v182, %v704
    %v1016 = vadd.f32 %v183, %v706
    %v1017 = vadd.f32 %v184, %v708
    %v1018 = vadd.f32 %v185, %v712
    %v1019 = vadd.f32 %v186, %v714
    %v1020 = vadd.f32 %v187, %v716
    %v1021 = vadd.f32 %v188, %v718
    %v1022 = vadd.f32 %v189, %v722
    %v1023 = vadd.f32 %v190, %v724
    %v1024 = vadd.f32 %v191, %v726
    %v1025 = vadd.f32 %v192, %v728
    %v1026 = vadd.f32 %v193, %v732
    %v1027 = vadd.f32 %v194, %v734
    %v1028 = vadd.f32 %v195, %v736
    %v1029 = vadd.f32 %v196, %v738
    %v1030 = vadd.f32 %v197, %v742
    %v1031 = vadd.f32 %v198, %v744
    %v1032 = vadd.f32 %v199, %v746
    %v1033 = vadd.f32 %v200, %v748
    %v1034 = vadd.f32 %v201, %v752
    %v1035 = vadd.f32 %v202, %v754
    %v1036 = vadd.f32 %v203, %v756
    %v1037 = vadd.f32 %v204, %v758
    %v1038 = vadd.f32 %v205, %v762
    %v1039 = vadd.f32 %v206, %v764
    %v1040 = vadd.f32 %v207, %v766
    %v1041 = vadd.f32 %v208, %v768
    %v1042 = vadd.f32 %v209, %v772
    %v1043 = vadd.f32 %v210, %v774
    %v1044 = vadd.f32 %v211, %v776
    %v1045 = vadd.f32 %v212, %v778
    %v1046 = vadd.f32 %v213, %v782
    %v1047 = vadd.f32 %v214, %v784
    %v1048 = vadd.f32 %v215, %v786
    %v1049 = vadd.f32 %v216, %v788
    %v1050 = vadd.f32 %v217, %v792
    %v1051 = vadd.f32 %v218, %v794
    %v1052 = vadd.f32 %v219, %v796
    %v1053 = vadd.f32 %v220, %v798
    %v1054 = vadd.f32 %v221, %v802
    %v1055 = vadd.f32 %v222, %v804
    %v1056 = vadd.f32 %v223, %v806
    %v1057 = vadd.f32 %v224, %v808
    %v1058 = vadd.f32 %v225, %v812
    %v1059 = vadd.f32 %v226, %v814
    %v1060 = vadd.f32 %v227, %v816
    %v1061 = vadd.f32 %v228, %v818
    %v1062 = vadd.f32 %v229, %v822
    %v1063 = vadd.f32 %v230, %v824
    %v1064 = vadd.f32 %v231, %v826
    %v1065 = vadd.f32 %v232, %v828
    %v1066 = vadd.f32 %v233, %v832
    %v1067 = vadd.f32 %v234, %v834
    %v1068 = vadd.f32 %v235, %v836
    %v1069 = vadd.f32 %v236, %v838
    %v1070 = vadd.f32 %v237, %v842
    %v1071 = vadd.f32 %v238, %v844
    %v1072 = vadd.f32 %v239, %v846
    %v1073 = vadd.f32 %v240, %v848
    %v1074 = vadd.f32 %v241, %v852
    %v1075 = vadd.f32 %v242, %v854
    %v1076 = vadd.f32 %v243, %v856
    %v1077 = vadd.f32 %v244, %v858
    %v1078 = vadd.f32 %v245, %v862
    %v1079 = vadd.f32 %v246, %v864
    %v1080 = vadd.f32 %v247, %v866
    %v1081 = vadd.f32 %v248, %v868
    %v1082 = vadd.f32 %v249, %v872
    %v1083 = vadd.f32 %v250, %v874
    %v1084 = vadd.f32 %v251, %v876
    %v1085 = vadd.f32 %v252, %v878
    %v1086 = vadd.f32 %v253, %v882
    %v1087 = vadd.f32 %v254, %v884
    %v1088 = vadd.f32 %v255, %v886
    %v1089 = vadd.f32 %v256, %v888
    %v1090 = vadd.f32 %v257, %v892
    %v1091 = vadd.f32 %v258, %v894
    %v1092 = vadd.f32 %v259, %v896
    %v1093 = vadd.f32 %v260, %v898
    %v1094 = vadd.f32 %v261, %v902
    %v1095 = vadd.f32 %v262, %v904
    %v1096 = vadd.f32 %v263, %v906
    %v1097 = vadd.f32 %v264, %v908
    %v1098 = vadd.f32 %v265, %v912
    %v1099 = vadd.f32 %v266, %v914
    %v1100 = vadd.f32 %v267, %v916
    %v1101 = vadd.f32 %v268, %v918
    %v1102 = vadd.f32 %v269, %v922
    %v1103 = vadd.f32 %v270, %v924
    %v1104 = vadd.f32 %v271, %v926
    %v1105 = vadd.f32 %v272, %v928
    %v1106 = vadd.f32 %v273, %v932
    %v1107 = vadd.f32 %v274, %v934
    %v1108 = vadd.f32 %v275, %v936
    %v1109 = vadd.f32 %v276, %v938
    %v1110 = vadd.f32 %v277, %v942
    %v1111 = vadd.f32 %v278, %v944
    %v1112 = vadd.f32 %v279, %v946
    %v1113 = vadd.f32 %v280, %v948
    %v1114 = vadd.f32 %v281, %v952
    %v1115 = vadd.f32 %v282, %v954
    %v1116 = vadd.f32 %v283, %v956
    %v1117 = vadd.f32 %v284, %v958
    %v1118 = vadd.f32 %v285, %v962
    %v1119 = vadd.f32 %v286, %v964
    %v1120 = vadd.f32 %v287, %v966
    %v1121 = vadd.f32 %v288, %v968
    %v1122 = vadd.f32 %v289, %v972
    %v1123 = vadd.f32 %v290, %v974
    %v1124 = vadd.f32 %v291, %v976
    %v1125 = vadd.f32 %v292, %v978
    %v1126 = vadd.f32 %v293, %v982
    %v1127 = vadd.f32 %v294, %v984
    %v1128 = vadd.f32 %v295, %v986
    %v1129 = vadd.f32 %v296, %v988
    %v1130 = vadd.f32 %v297, %v992
    %v1131 = vadd.f32 %v298, %v994
    %v1132 = vadd.f32 %v299, %v996
    %v1133 = vadd.f32 %v300, %v998
    %v1134 = vadd.f32 %v301, %v1002
    %v1135 = vadd.f32 %v302, %v1004
    %v1136 = vadd.f32 %v303, %v1006
    %v1137 = vadd.f32 %v304, %v1008
    %1138 = vst [vmem:[#allocation2] sm:$0xff] %v1010
    %1139 = vst [vmem:[#allocation2 + $0x8] sm:$0xff] %v1011
    %1140 = vst [vmem:[#allocation2 + $0x10] sm:$0xff] %v1012
    %1141 = vst [vmem:[#allocation2 + $0x18] sm:$0xff] %v1013
    %1142 = vst [vmem:[#allocation2 + $0x20] sm:$0xff] %v1014
    %1143 = vst [vmem:[#allocation2 + $0x28] sm:$0xff] %v1015
    %1144 = vst [vmem:[#allocation2 + $0x30] sm:$0xff] %v1016
    %1145 = vst [vmem:[#allocation2 + $0x38] sm:$0xff] %v1017
    %1146 = vst [vmem:[#allocation2 + $0x40] sm:$0xff] %v1018
    %1147 = vst [vmem:[#allocation2 + $0x48] sm:$0xff] %v1019
    %1148 = vst [vmem:[#allocation2 + $0x50] sm:$0xff] %v1020
    %1149 = vst [vmem:[#allocation2 + $0x58] sm:$0xff] %v1021
    %1150 = vst [vmem:[#allocation2 + $0x60] sm:$0xff] %v1022
    %1151 = vst [vmem:[#allocation2 + $0x68] sm:$0xff] %v1023
    %1152 = vst [vmem:[#allocation2 + $0x70] sm:$0xff] %v1024
    %1153 = vst [vmem:[#allocation2 + $0x78] sm:$0xff] %v1025
    %1154 = vst [vmem:[#allocation2 + $0x80] sm:$0xff] %v1026
    %1155 = vst [vmem:[#allocation2 + $0x88] sm:$0xff] %v1027
    %1156 = vst [vmem:[#allocation2 + $0x90] sm:$0xff] %v1028
    %1157 = vst [vmem:[#allocation2 + $0x98] sm:$0xff] %v1029
    %1158 = vst [vmem:[#allocation2 + $0xa0] sm:$0xff] %v1030
    %1159 = vst [vmem:[#allocation2 + $0xa8] sm:$0xff] %v1031
    %1160 = vst [vmem:[#allocation2 + $0xb0] sm:$0xff] %v1032
    %1161 = vst [vmem:[#allocation2 + $0xb8] sm:$0xff] %v1033
    %1162 = vst [vmem:[#allocation2 + $0xc0] sm:$0xff] %v1034
    %1163 = vst [vmem:[#allocation2 + $0xc8] sm:$0xff] %v1035
    %1164 = vst [vmem:[#allocation2 + $0xd0] sm:$0xff] %v1036
    %1165 = vst [vmem:[#allocation2 + $0xd8] sm:$0xff] %v1037
    %1166 = vst [vmem:[#allocation2 + $0xe0] sm:$0xff] %v1038
    %1167 = vst [vmem:[#allocation2 + $0xe8] sm:$0xff] %v1039
    %1168 = vst [vmem:[#allocation2 + $0xf0] sm:$0xff] %v1040
    %1169 = vst [vmem:[#allocation2 + $0xf8] sm:$0xff] %v1041
    %1170 = vst [vmem:[#allocation2 + $0x100] sm:$0xff] %v1042
    %1171 = vst [vmem:[#allocation2 + $0x108] sm:$0xff] %v1043
    %1172 = vst [vmem:[#allocation2 + $0x110] sm:$0xff] %v1044
    %1173 = vst [vmem:[#allocation2 + $0x118] sm:$0xff] %v1045
    %1174 = vst [vmem:[#allocation2 + $0x120] sm:$0xff] %v1046
    %1175 = vst [vmem:[#allocation2 + $0x128] sm:$0xff] %v1047
    %1176 = vst [vmem:[#allocation2 + $0x130] sm:$0xff] %v1048
    %1177 = vst [vmem:[#allocation2 + $0x138] sm:$0xff] %v1049
    %1178 = vst [vmem:[#allocation2 + $0x140] sm:$0xff] %v1050
    %1179 = vst [vmem:[#allocation2 + $0x148] sm:$0xff] %v1051
    %1180 = vst [vmem:[#allocation2 + $0x150] sm:$0xff] %v1052
    %1181 = vst [vmem:[#allocation2 + $0x158] sm:$0xff] %v1053
    %1182 = vst [vmem:[#allocation2 + $0x160] sm:$0xff] %v1054
    %1183 = vst [vmem:[#allocation2 + $0x168] sm:$0xff] %v1055
    %1184 = vst [vmem:[#allocation2 + $0x170] sm:$0xff] %v1056
    %1185 = vst [vmem:[#allocation2 + $0x178] sm:$0xff] %v1057
    %1186 = vst [vmem:[#allocation2 + $0x180] sm:$0xff] %v1058
    %1187 = vst [vmem:[#allocation2 + $0x188] sm:$0xff] %v1059
    %1188 = vst [vmem:[#allocation2 + $0x190] sm:$0xff] %v1060
    %1189 = vst [vmem:[#allocation2 + $0x198] sm:$0xff] %v1061
    %1190 = vst [vmem:[#allocation2 + $0x1a0] sm:$0xff] %v1062
    %1191 = vst [vmem:[#allocation2 + $0x1a8] sm:$0xff] %v1063
    %1192 = vst [vmem:[#allocation2 + $0x1b0] sm:$0xff] %v1064
    %1193 = vst [vmem:[#allocation2 + $0x1b8] sm:$0xff] %v1065
    %1194 = vst [vmem:[#allocation2 + $0x1c0] sm:$0xff] %v1066
    %1195 = vst [vmem:[#allocation2 + $0x1c8] sm:$0xff] %v1067
    %1196 = vst [vmem:[#allocation2 + $0x1d0] sm:$0xff] %v1068
    %1197 = vst [vmem:[#allocation2 + $0x1d8] sm:$0xff] %v1069
    %1198 = vst [vmem:[#allocation2 + $0x1e0] sm:$0xff] %v1070
    %1199 = vst [vmem:[#allocation2 + $0x1e8] sm:$0xff] %v1071
    %1200 = vst [vmem:[#allocation2 + $0x1f0] sm:$0xff] %v1072
    %1201 = vst [vmem:[#allocation2 + $0x1f8] sm:$0xff] %v1073
    %1202 = vst [vmem:[#allocation2 + $0x200] sm:$0xff] %v1074
    %1203 = vst [vmem:[#allocation2 + $0x208] sm:$0xff] %v1075
    %1204 = vst [vmem:[#allocation2 + $0x210] sm:$0xff] %v1076
    %1205 = vst [vmem:[#allocation2 + $0x218] sm:$0xff] %v1077
    %1206 = vst [vmem:[#allocation2 + $0x220] sm:$0xff] %v1078
    %1207 = vst [vmem:[#allocation2 + $0x228] sm:$0xff] %v1079
    %1208 = vst [vmem:[#allocation2 + $0x230] sm:$0xff] %v1080
    %1209 = vst [vmem:[#allocation2 + $0x238] sm:$0xff] %v1081
    %1210 = vst [vmem:[#allocation2 + $0x240] sm:$0xff] %v1082
    %1211 = vst [vmem:[#allocation2 + $0x248] sm:$0xff] %v1083
    %1212 = vst [vmem:[#allocation2 + $0x250] sm:$0xff] %v1084
    %1213 = vst [vmem:[#allocation2 + $0x258] sm:$0xff] %v1085
    %1214 = vst [vmem:[#allocation2 + $0x260] sm:$0xff] %v1086
    %1215 = vst [vmem:[#allocation2 + $0x268] sm:$0xff] %v1087
    %1216 = vst [vmem:[#allocation2 + $0x270] sm:$0xff] %v1088
    %1217 = vst [vmem:[#allocation2 + $0x278] sm:$0xff] %v1089
    %1218 = vst [vmem:[#allocation2 + $0x280] sm:$0xff] %v1090
    %1219 = vst [vmem:[#allocation2 + $0x288] sm:$0xff] %v1091
    %1220 = vst [vmem:[#allocation2 + $0x290] sm:$0xff] %v1092
    %1221 = vst [vmem:[#allocation2 + $0x298] sm:$0xff] %v1093
    %1222 = vst [vmem:[#allocation2 + $0x2a0] sm:$0xff] %v1094
    %1223 = vst [vmem:[#allocation2 + $0x2a8] sm:$0xff] %v1095
    %1224 = vst [vmem:[#allocation2 + $0x2b0] sm:$0xff] %v1096
    %1225 = vst [vmem:[#allocation2 + $0x2b8] sm:$0xff] %v1097
    %1226 = vst [vmem:[#allocation2 + $0x2c0] sm:$0xff] %v1098
    %1227 = vst [vmem:[#allocation2 + $0x2c8] sm:$0xff] %v1099
    %1228 = vst [vmem:[#allocation2 + $0x2d0] sm:$0xff] %v1100
    %1229 = vst [vmem:[#allocation2 + $0x2d8] sm:$0xff] %v1101
    %1230 = vst [vmem:[#allocation2 + $0x2e0] sm:$0xff] %v1102
    %1231 = vst [vmem:[#allocation2 + $0x2e8] sm:$0xff] %v1103
    %1232 = vst [vmem:[#allocation2 + $0x2f0] sm:$0xff] %v1104
    %1233 = vst [vmem:[#allocation2 + $0x2f8] sm:$0xff] %v1105
    %1234 = vst [vmem:[#allocation2 + $0x300] sm:$0xff] %v1106
    %1235 = vst [vmem:[#allocation2 + $0x308] sm:$0xff] %v1107
    %1236 = vst [vmem:[#allocation2 + $0x310] sm:$0xff] %v1108
    %1237 = vst [vmem:[#allocation2 + $0x318] sm:$0xff] %v1109
    %1238 = vst [vmem:[#allocation2 + $0x320] sm:$0xff] %v1110
    %1239 = vst [vmem:[#allocation2 + $0x328] sm:$0xff] %v1111
    %1240 = vst [vmem:[#allocation2 + $0x330] sm:$0xff] %v1112
    %1241 = vst [vmem:[#allocation2 + $0x338] sm:$0xff] %v1113
    %1242 = vst [vmem:[#allocation2 + $0x340] sm:$0xff] %v1114
    %1243 = vst [vmem:[#allocation2 + $0x348] sm:$0xff] %v1115
    %1244 = vst [vmem:[#allocation2 + $0x350] sm:$0xff] %v1116
    %1245 = vst [vmem:[#allocation2 + $0x358] sm:$0xff] %v1117
    %1246 = vst [vmem:[#allocation2 + $0x360] sm:$0xff] %v1118
    %1247 = vst [vmem:[#allocation2 + $0x368] sm:$0xff] %v1119
    %1248 = vst [vmem:[#allocation2 + $0x370] sm:$0xff] %v1120
    %1249 = vst [vmem:[#allocation2 + $0x378] sm:$0xff] %v1121
    %1250 = vst [vmem:[#allocation2 + $0x380] sm:$0xff] %v1122
    %1251 = vst [vmem:[#allocation2 + $0x388] sm:$0xff] %v1123
    %1252 = vst [vmem:[#allocation2 + $0x390] sm:$0xff] %v1124
    %1253 = vst [vmem:[#allocation2 + $0x398] sm:$0xff] %v1125
    %1254 = vst [vmem:[#allocation2 + $0x3a0] sm:$0xff] %v1126
    %1255 = vst [vmem:[#allocation2 + $0x3a8] sm:$0xff] %v1127
    %1256 = vst [vmem:[#allocation2 + $0x3b0] sm:$0xff] %v1128
    %1257 = vst [vmem:[#allocation2 + $0x3b8] sm:$0xff] %v1129
    %1258 = vst [vmem:[#allocation2 + $0x3c0] sm:$0xff] %v1130
    %1259 = vst [vmem:[#allocation2 + $0x3c8] sm:$0xff] %v1131
    %1260 = vst [vmem:[#allocation2 + $0x3d0] sm:$0xff] %v1132
    %1261 = vst [vmem:[#allocation2 + $0x3d8] sm:$0xff] %v1133
    %1262 = vst [vmem:[#allocation2 + $0x3e0] sm:$0xff] %v1134
    %1263 = vst [vmem:[#allocation2 + $0x3e8] sm:$0xff] %v1135
    %1264 = vst [vmem:[#allocation2 + $0x3f0] sm:$0xff] %v1136
    %1265 = vst [vmem:[#allocation2 + $0x3f8] sm:$0xff] %v1137
    // Predicated region
    $region22: #{tpu_custom_call.1} parent=1 // pred_check
      %p1266 = pneg %p45
    $region23: #{tpu_custom_call.1} parent=1 // pred_check_branch
      %1268 = sbr.rel (%p1266) target = $region25
    $region24: #{tpu_custom_call.1} parent=1 // pred_region
      %v1269 = vld [vmem:[#allocation2] sm:$0xff]
      %v1270 = vld [vmem:[#allocation2 + $0x8] sm:$0xff]
      %v1271 = vld [vmem:[#allocation2 + $0x10] sm:$0xff]
      %v1272 = vld [vmem:[#allocation2 + $0x18] sm:$0xff]
      %v1273 = vld [vmem:[#allocation2 + $0x20] sm:$0xff]
      %v1274 = vld [vmem:[#allocation2 + $0x28] sm:$0xff]
      %v1275 = vld [vmem:[#allocation2 + $0x30] sm:$0xff]
      %v1276 = vld [vmem:[#allocation2 + $0x38] sm:$0xff]
      %v1277 = vld [vmem:[#allocation2 + $0x40] sm:$0xff]
      %v1278 = vld [vmem:[#allocation2 + $0x48] sm:$0xff]
      %v1279 = vld [vmem:[#allocation2 + $0x50] sm:$0xff]
      %v1280 = vld [vmem:[#allocation2 + $0x58] sm:$0xff]
      %v1281 = vld [vmem:[#allocation2 + $0x60] sm:$0xff]
      %v1282 = vld [vmem:[#allocation2 + $0x68] sm:$0xff]
      %v1283 = vld [vmem:[#allocation2 + $0x70] sm:$0xff]
      %v1284 = vld [vmem:[#allocation2 + $0x78] sm:$0xff]
      %v1285 = vld [vmem:[#allocation2 + $0x80] sm:$0xff]
      %v1286 = vld [vmem:[#allocation2 + $0x88] sm:$0xff]
      %v1287 = vld [vmem:[#allocation2 + $0x90] sm:$0xff]
      %v1288 = vld [vmem:[#allocation2 + $0x98] sm:$0xff]
      %v1289 = vld [vmem:[#allocation2 + $0xa0] sm:$0xff]
      %v1290 = vld [vmem:[#allocation2 + $0xa8] sm:$0xff]
      %v1291 = vld [vmem:[#allocation2 + $0xb0] sm:$0xff]
      %v1292 = vld [vmem:[#allocation2 + $0xb8] sm:$0xff]
      %v1293 = vld [vmem:[#allocation2 + $0xc0] sm:$0xff]
      %v1294 = vld [vmem:[#allocation2 + $0xc8] sm:$0xff]
      %v1295 = vld [vmem:[#allocation2 + $0xd0] sm:$0xff]
      %v1296 = vld [vmem:[#allocation2 + $0xd8] sm:$0xff]
      %v1297 = vld [vmem:[#allocation2 + $0xe0] sm:$0xff]
      %v1298 = vld [vmem:[#allocation2 + $0xe8] sm:$0xff]
      %v1299 = vld [vmem:[#allocation2 + $0xf0] sm:$0xff]
      %v1300 = vld [vmem:[#allocation2 + $0xf8] sm:$0xff]
      %v1301 = vld [vmem:[#allocation2 + $0x100] sm:$0xff]
      %v1302 = vld [vmem:[#allocation2 + $0x108] sm:$0xff]
      %v1303 = vld [vmem:[#allocation2 + $0x110] sm:$0xff]
      %v1304 = vld [vmem:[#allocation2 + $0x118] sm:$0xff]
      %v1305 = vld [vmem:[#allocation2 + $0x120] sm:$0xff]
      %v1306 = vld [vmem:[#allocation2 + $0x128] sm:$0xff]
      %v1307 = vld [vmem:[#allocation2 + $0x130] sm:$0xff]
      %v1308 = vld [vmem:[#allocation2 + $0x138] sm:$0xff]
      %v1309 = vld [vmem:[#allocation2 + $0x140] sm:$0xff]
      %v1310 = vld [vmem:[#allocation2 + $0x148] sm:$0xff]
      %v1311 = vld [vmem:[#allocation2 + $0x150] sm:$0xff]
      %v1312 = vld [vmem:[#allocation2 + $0x158] sm:$0xff]
      %v1313 = vld [vmem:[#allocation2 + $0x160] sm:$0xff]
      %v1314 = vld [vmem:[#allocation2 + $0x168] sm:$0xff]
      %v1315 = vld [vmem:[#allocation2 + $0x170] sm:$0xff]
      %v1316 = vld [vmem:[#allocation2 + $0x178] sm:$0xff]
      %v1317 = vld [vmem:[#allocation2 + $0x180] sm:$0xff]
      %v1318 = vld [vmem:[#allocation2 + $0x188] sm:$0xff]
      %v1319 = vld [vmem:[#allocation2 + $0x190] sm:$0xff]
      %v1320 = vld [vmem:[#allocation2 + $0x198] sm:$0xff]
      %v1321 = vld [vmem:[#allocation2 + $0x1a0] sm:$0xff]
      %v1322 = vld [vmem:[#allocation2 + $0x1a8] sm:$0xff]
      %v1323 = vld [vmem:[#allocation2 + $0x1b0] sm:$0xff]
      %v1324 = vld [vmem:[#allocation2 + $0x1b8] sm:$0xff]
      %v1325 = vld [vmem:[#allocation2 + $0x1c0] sm:$0xff]
      %v1326 = vld [vmem:[#allocation2 + $0x1c8] sm:$0xff]
      %v1327 = vld [vmem:[#allocation2 + $0x1d0] sm:$0xff]
      %v1328 = vld [vmem:[#allocation2 + $0x1d8] sm:$0xff]
      %v1329 = vld [vmem:[#allocation2 + $0x1e0] sm:$0xff]
      %v1330 = vld [vmem:[#allocation2 + $0x1e8] sm:$0xff]
      %v1331 = vld [vmem:[#allocation2 + $0x1f0] sm:$0xff]
      %v1332 = vld [vmem:[#allocation2 + $0x1f8] sm:$0xff]
      %v1333 = vld [vmem:[#allocation2 + $0x200] sm:$0xff]
      %v1334 = vld [vmem:[#allocation2 + $0x208] sm:$0xff]
      %v1335 = vld [vmem:[#allocation2 + $0x210] sm:$0xff]
      %v1336 = vld [vmem:[#allocation2 + $0x218] sm:$0xff]
      %v1337 = vld [vmem:[#allocation2 + $0x220] sm:$0xff]
      %v1338 = vld [vmem:[#allocation2 + $0x228] sm:$0xff]
      %v1339 = vld [vmem:[#allocation2 + $0x230] sm:$0xff]
      %v1340 = vld [vmem:[#allocation2 + $0x238] sm:$0xff]
      %v1341 = vld [vmem:[#allocation2 + $0x240] sm:$0xff]
      %v1342 = vld [vmem:[#allocation2 + $0x248] sm:$0xff]
      %v1343 = vld [vmem:[#allocation2 + $0x250] sm:$0xff]
      %v1344 = vld [vmem:[#allocation2 + $0x258] sm:$0xff]
      %v1345 = vld [vmem:[#allocation2 + $0x260] sm:$0xff]
      %v1346 = vld [vmem:[#allocation2 + $0x268] sm:$0xff]
      %v1347 = vld [vmem:[#allocation2 + $0x270] sm:$0xff]
      %v1348 = vld [vmem:[#allocation2 + $0x278] sm:$0xff]
      %v1349 = vld [vmem:[#allocation2 + $0x280] sm:$0xff]
      %v1350 = vld [vmem:[#allocation2 + $0x288] sm:$0xff]
      %v1351 = vld [vmem:[#allocation2 + $0x290] sm:$0xff]
      %v1352 = vld [vmem:[#allocation2 + $0x298] sm:$0xff]
      %v1353 = vld [vmem:[#allocation2 + $0x2a0] sm:$0xff]
      %v1354 = vld [vmem:[#allocation2 + $0x2a8] sm:$0xff]
      %v1355 = vld [vmem:[#allocation2 + $0x2b0] sm:$0xff]
      %v1356 = vld [vmem:[#allocation2 + $0x2b8] sm:$0xff]
      %v1357 = vld [vmem:[#allocation2 + $0x2c0] sm:$0xff]
      %v1358 = vld [vmem:[#allocation2 + $0x2c8] sm:$0xff]
      %v1359 = vld [vmem:[#allocation2 + $0x2d0] sm:$0xff]
      %v1360 = vld [vmem:[#allocation2 + $0x2d8] sm:$0xff]
      %v1361 = vld [vmem:[#allocation2 + $0x2e0] sm:$0xff]
      %v1362 = vld [vmem:[#allocation2 + $0x2e8] sm:$0xff]
      %v1363 = vld [vmem:[#allocation2 + $0x2f0] sm:$0xff]
      %v1364 = vld [vmem:[#allocation2 + $0x2f8] sm:$0xff]
      %v1365 = vld [vmem:[#allocation2 + $0x300] sm:$0xff]
      %v1366 = vld [vmem:[#allocation2 + $0x308] sm:$0xff]
      %v1367 = vld [vmem:[#allocation2 + $0x310] sm:$0xff]
      %v1368 = vld [vmem:[#allocation2 + $0x318] sm:$0xff]
      %v1369 = vld [vmem:[#allocation2 + $0x320] sm:$0xff]
      %v1370 = vld [vmem:[#allocation2 + $0x328] sm:$0xff]
      %v1371 = vld [vmem:[#allocation2 + $0x330] sm:$0xff]
      %v1372 = vld [vmem:[#allocation2 + $0x338] sm:$0xff]
      %v1373 = vld [vmem:[#allocation2 + $0x340] sm:$0xff]
      %v1374 = vld [vmem:[#allocation2 + $0x348] sm:$0xff]
      %v1375 = vld [vmem:[#allocation2 + $0x350] sm:$0xff]
      %v1376 = vld [vmem:[#allocation2 + $0x358] sm:$0xff]
      %v1377 = vld [vmem:[#allocation2 + $0x360] sm:$0xff]
      %v1378 = vld [vmem:[#allocation2 + $0x368] sm:$0xff]
      %v1379 = vld [vmem:[#allocation2 + $0x370] sm:$0xff]
      %v1380 = vld [vmem:[#allocation2 + $0x378] sm:$0xff]
      %v1381 = vld [vmem:[#allocation2 + $0x380] sm:$0xff]
      %v1382 = vld [vmem:[#allocation2 + $0x388] sm:$0xff]
      %v1383 = vld [vmem:[#allocation2 + $0x390] sm:$0xff]
      %v1384 = vld [vmem:[#allocation2 + $0x398] sm:$0xff]
      %v1385 = vld [vmem:[#allocation2 + $0x3a0] sm:$0xff]
      %v1386 = vld [vmem:[#allocation2 + $0x3a8] sm:$0xff]
      %v1387 = vld [vmem:[#allocation2 + $0x3b0] sm:$0xff]
      %v1388 = vld [vmem:[#allocation2 + $0x3b8] sm:$0xff]
      %v1389 = vld [vmem:[#allocation2 + $0x3c0] sm:$0xff]
      %v1390 = vld [vmem:[#allocation2 + $0x3c8] sm:$0xff]
      %v1391 = vld [vmem:[#allocation2 + $0x3d0] sm:$0xff]
      %v1392 = vld [vmem:[#allocation2 + $0x3d8] sm:$0xff]
      %v1393 = vld [vmem:[#allocation2 + $0x3e0] sm:$0xff]
      %v1394 = vld [vmem:[#allocation2 + $0x3e8] sm:$0xff]
      %v1395 = vld [vmem:[#allocation2 + $0x3f0] sm:$0xff]
      %v1396 = vld [vmem:[#allocation2 + $0x3f8] sm:$0xff]
      %v1397 = vpack.c.bf16 %v1271, %v1269
      %v1398 = vpack.c.bf16 %v1272, %v1270
      %v1399 = vpack.c.bf16 %v1275, %v1273
      %v1400 = vpack.c.bf16 %v1276, %v1274
      %v1401 = vpack.c.bf16 %v1279, %v1277
      %v1402 = vpack.c.bf16 %v1280, %v1278
      %v1403 = vpack.c.bf16 %v1283, %v1281
      %v1404 = vpack.c.bf16 %v1284, %v1282
      %v1405 = vpack.c.bf16 %v1287, %v1285
      %v1406 = vpack.c.bf16 %v1288, %v1286
      %v1407 = vpack.c.bf16 %v1291, %v1289
      %v1408 = vpack.c.bf16 %v1292, %v1290
      %v1409 = vpack.c.bf16 %v1295, %v1293
      %v1410 = vpack.c.bf16 %v1296, %v1294
      %v1411 = vpack.c.bf16 %v1299, %v1297
      %v1412 = vpack.c.bf16 %v1300, %v1298
      %v1413 = vpack.c.bf16 %v1303, %v1301
      %v1414 = vpack.c.bf16 %v1304, %v1302
      %v1415 = vpack.c.bf16 %v1307, %v1305
      %v1416 = vpack.c.bf16 %v1308, %v1306
      %v1417 = vpack.c.bf16 %v1311, %v1309
      %v1418 = vpack.c.bf16 %v1312, %v1310
      %v1419 = vpack.c.bf16 %v1315, %v1313
      %v1420 = vpack.c.bf16 %v1316, %v1314
      %v1421 = vpack.c.bf16 %v1319, %v1317
      %v1422 = vpack.c.bf16 %v1320, %v1318
      %v1423 = vpack.c.bf16 %v1323, %v1321
      %v1424 = vpack.c.bf16 %v1324, %v1322
      %v1425 = vpack.c.bf16 %v1327, %v1325
      %v1426 = vpack.c.bf16 %v1328, %v1326
      %v1427 = vpack.c.bf16 %v1331, %v1329
      %v1428 = vpack.c.bf16 %v1332, %v1330
      %v1429 = vpack.c.bf16 %v1335, %v1333
      %v1430 = vpack.c.bf16 %v1336, %v1334
      %v1431 = vpack.c.bf16 %v1339, %v1337
      %v1432 = vpack.c.bf16 %v1340, %v1338
      %v1433 = vpack.c.bf16 %v1343, %v1341
      %v1434 = vpack.c.bf16 %v1344, %v1342
      %v1435 = vpack.c.bf16 %v1347, %v1345
      %v1436 = vpack.c.bf16 %v1348, %v1346
      %v1437 = vpack.c.bf16 %v1351, %v1349
      %v1438 = vpack.c.bf16 %v1352, %v1350
      %v1439 = vpack.c.bf16 %v1355, %v1353
      %v1440 = vpack.c.bf16 %v1356, %v1354
      %v1441 = vpack.c.bf16 %v1359, %v1357
      %v1442 = vpack.c.bf16 %v1360, %v1358
      %v1443 = vpack.c.bf16 %v1363, %v1361
      %v1444 = vpack.c.bf16 %v1364, %v1362
      %v1445 = vpack.c.bf16 %v1367, %v1365
      %v1446 = vpack.c.bf16 %v1368, %v1366
      %v1447 = vpack.c.bf16 %v1371, %v1369
      %v1448 = vpack.c.bf16 %v1372, %v1370
      %v1449 = vpack.c.bf16 %v1375, %v1373
      %v1450 = vpack.c.bf16 %v1376, %v1374
      %v1451 = vpack.c.bf16 %v1379, %v1377
      %v1452 = vpack.c.bf16 %v1380, %v1378
      %v1453 = vpack.c.bf16 %v1383, %v1381
      %v1454 = vpack.c.bf16 %v1384, %v1382
      %v1455 = vpack.c.bf16 %v1387, %v1385
      %v1456 = vpack.c.bf16 %v1388, %v1386
      %v1457 = vpack.c.bf16 %v1391, %v1389
      %v1458 = vpack.c.bf16 %v1392, %v1390
      %v1459 = vpack.c.bf16 %v1395, %v1393
      %v1460 = vpack.c.bf16 %v1396, %v1394
      %v1525 = vunpack.c.l.b16 %v1397
      %v1526 = vunpack.c.l.b16 %v1398
      %v1527 = vunpack.c.h.b16 %v1397
      %v1528 = vunpack.c.h.b16 %v1398
      %v1529 = vunpack.c.l.b16 %v1399
      %v1530 = vunpack.c.l.b16 %v1400
      %v1531 = vunpack.c.h.b16 %v1399
      %v1532 = vunpack.c.h.b16 %v1400
      %v1533 = vunpack.c.l.b16 %v1401
      %v1534 = vunpack.c.l.b16 %v1402
      %v1535 = vunpack.c.h.b16 %v1401
      %v1536 = vunpack.c.h.b16 %v1402
      %v1537 = vunpack.c.l.b16 %v1403
      %v1538 = vunpack.c.l.b16 %v1404
      %v1539 = vunpack.c.h.b16 %v1403
      %v1540 = vunpack.c.h.b16 %v1404
      %v1541 = vunpack.c.l.b16 %v1405
      %v1542 = vunpack.c.l.b16 %v1406
      %v1543 = vunpack.c.h.b16 %v1405
      %v1544 = vunpack.c.h.b16 %v1406
      %v1545 = vunpack.c.l.b16 %v1407
      %v1546 = vunpack.c.l.b16 %v1408
      %v1547 = vunpack.c.h.b16 %v1407
      %v1548 = vunpack.c.h.b16 %v1408
      %v1549 = vunpack.c.l.b16 %v1409
      %v1550 = vunpack.c.l.b16 %v1410
      %v1551 = vunpack.c.h.b16 %v1409
      %v1552 = vunpack.c.h.b16 %v1410
      %v1553 = vunpack.c.l.b16 %v1411
      %v1554 = vunpack.c.l.b16 %v1412
      %v1555 = vunpack.c.h.b16 %v1411
      %v1556 = vunpack.c.h.b16 %v1412
      %v1557 = vunpack.c.l.b16 %v1413
      %v1558 = vunpack.c.l.b16 %v1414
      %v1559 = vunpack.c.h.b16 %v1413
      %v1560 = vunpack.c.h.b16 %v1414
      %v1561 = vunpack.c.l.b16 %v1415
      %v1562 = vunpack.c.l.b16 %v1416
      %v1563 = vunpack.c.h.b16 %v1415
      %v1564 = vunpack.c.h.b16 %v1416
      %v1565 = vunpack.c.l.b16 %v1417
      %v1566 = vunpack.c.l.b16 %v1418
      %v1567 = vunpack.c.h.b16 %v1417
      %v1568 = vunpack.c.h.b16 %v1418
      %v1569 = vunpack.c.l.b16 %v1419
      %v1570 = vunpack.c.l.b16 %v1420
      %v1571 = vunpack.c.h.b16 %v1419
      %v1572 = vunpack.c.h.b16 %v1420
      %v1573 = vunpack.c.l.b16 %v1421
      %v1574 = vunpack.c.l.b16 %v1422
      %v1575 = vunpack.c.h.b16 %v1421
      %v1576 = vunpack.c.h.b16 %v1422
      %v1577 = vunpack.c.l.b16 %v1423
      %v1578 = vunpack.c.l.b16 %v1424
      %v1579 = vunpack.c.h.b16 %v1423
      %v1580 = vunpack.c.h.b16 %v1424
      %v1581 = vunpack.c.l.b16 %v1425
      %v1582 = vunpack.c.l.b16 %v1426
      %v1583 = vunpack.c.h.b16 %v1425
      %v1584 = vunpack.c.h.b16 %v1426
      %v1585 = vunpack.c.l.b16 %v1427
      %v1586 = vunpack.c.l.b16 %v1428
      %v1587 = vunpack.c.h.b16 %v1427
      %v1588 = vunpack.c.h.b16 %v1428
      %v1589 = vunpack.c.l.b16 %v1429
      %v1590 = vunpack.c.l.b16 %v1430
      %v1591 = vunpack.c.h.b16 %v1429
      %v1592 = vunpack.c.h.b16 %v1430
      %v1593 = vunpack.c.l.b16 %v1431
      %v1594 = vunpack.c.l.b16 %v1432
      %v1595 = vunpack.c.h.b16 %v1431
      %v1596 = vunpack.c.h.b16 %v1432
      %v1597 = vunpack.c.l.b16 %v1433
      %v1598 = vunpack.c.l.b16 %v1434
      %v1599 = vunpack.c.h.b16 %v1433
      %v1600 = vunpack.c.h.b16 %v1434
      %v1601 = vunpack.c.l.b16 %v1435
      %v1602 = vunpack.c.l.b16 %v1436
      %v1603 = vunpack.c.h.b16 %v1435
      %v1604 = vunpack.c.h.b16 %v1436
      %v1605 = vunpack.c.l.b16 %v1437
      %v1606 = vunpack.c.l.b16 %v1438
      %v1607 = vunpack.c.h.b16 %v1437
      %v1608 = vunpack.c.h.b16 %v1438
      %v1609 = vunpack.c.l.b16 %v1439
      %v1610 = vunpack.c.l.b16 %v1440
      %v1611 = vunpack.c.h.b16 %v1439
      %v1612 = vunpack.c.h.b16 %v1440
      %v1613 = vunpack.c.l.b16 %v1441
      %v1614 = vunpack.c.l.b16 %v1442
      %v1615 = vunpack.c.h.b16 %v1441
      %v1616 = vunpack.c.h.b16 %v1442
      %v1617 = vunpack.c.l.b16 %v1443
      %v1618 = vunpack.c.l.b16 %v1444
      %v1619 = vunpack.c.h.b16 %v1443
      %v1620 = vunpack.c.h.b16 %v1444
      %v1621 = vunpack.c.l.b16 %v1445
      %v1622 = vunpack.c.l.b16 %v1446
      %v1623 = vunpack.c.h.b16 %v1445
      %v1624 = vunpack.c.h.b16 %v1446
      %v1625 = vunpack.c.l.b16 %v1447
      %v1626 = vunpack.c.l.b16 %v1448
      %v1627 = vunpack.c.h.b16 %v1447
      %v1628 = vunpack.c.h.b16 %v1448
      %v1629 = vunpack.c.l.b16 %v1449
      %v1630 = vunpack.c.l.b16 %v1450
      %v1631 = vunpack.c.h.b16 %v1449
      %v1632 = vunpack.c.h.b16 %v1450
      %v1633 = vunpack.c.l.b16 %v1451
      %v1634 = vunpack.c.l.b16 %v1452
      %v1635 = vunpack.c.h.b16 %v1451
      %v1636 = vunpack.c.h.b16 %v1452
      %v1637 = vunpack.c.l.b16 %v1453
      %v1638 = vunpack.c.l.b16 %v1454
      %v1639 = vunpack.c.h.b16 %v1453
      %v1640 = vunpack.c.h.b16 %v1454
      %v1641 = vunpack.c.l.b16 %v1455
      %v1642 = vunpack.c.l.b16 %v1456
      %v1643 = vunpack.c.h.b16 %v1455
      %v1644 = vunpack.c.h.b16 %v1456
      %v1645 = vunpack.c.l.b16 %v1457
      %v1646 = vunpack.c.l.b16 %v1458
      %v1647 = vunpack.c.h.b16 %v1457
      %v1648 = vunpack.c.h.b16 %v1458
      %v1649 = vunpack.c.l.b16 %v1459
      %v1650 = vunpack.c.l.b16 %v1460
      %v1651 = vunpack.c.h.b16 %v1459
      %v1652 = vunpack.c.h.b16 %v1460
      %v1653 = vpack.c.b16 %v1526, %v1525
      %v1654 = vpack.c.b16 %v1528, %v1527
      %v1655 = vpack.c.b16 %v1530, %v1529
      %v1656 = vpack.c.b16 %v1532, %v1531
      %v1657 = vpack.c.b16 %v1534, %v1533
      %v1658 = vpack.c.b16 %v1536, %v1535
      %v1659 = vpack.c.b16 %v1538, %v1537
      %v1660 = vpack.c.b16 %v1540, %v1539
      %v1661 = vpack.c.b16 %v1542, %v1541
      %v1662 = vpack.c.b16 %v1544, %v1543
      %v1663 = vpack.c.b16 %v1546, %v1545
      %v1664 = vpack.c.b16 %v1548, %v1547
      %v1665 = vpack.c.b16 %v1550, %v1549
      %v1666 = vpack.c.b16 %v1552, %v1551
      %v1667 = vpack.c.b16 %v1554, %v1553
      %v1668 = vpack.c.b16 %v1556, %v1555
      %v1669 = vpack.c.b16 %v1558, %v1557
      %v1670 = vpack.c.b16 %v1560, %v1559
      %v1671 = vpack.c.b16 %v1562, %v1561
      %v1672 = vpack.c.b16 %v1564, %v1563
      %v1673 = vpack.c.b16 %v1566, %v1565
      %v1674 = vpack.c.b16 %v1568, %v1567
      %v1675 = vpack.c.b16 %v1570, %v1569
      %v1676 = vpack.c.b16 %v1572, %v1571
      %v1677 = vpack.c.b16 %v1574, %v1573
      %v1678 = vpack.c.b16 %v1576, %v1575
      %v1679 = vpack.c.b16 %v1578, %v1577
      %v1680 = vpack.c.b16 %v1580, %v1579
      %v1681 = vpack.c.b16 %v1582, %v1581
      %v1682 = vpack.c.b16 %v1584, %v1583
      %v1683 = vpack.c.b16 %v1586, %v1585
      %v1684 = vpack.c.b16 %v1588, %v1587
      %v1685 = vpack.c.b16 %v1590, %v1589
      %v1686 = vpack.c.b16 %v1592, %v1591
      %v1687 = vpack.c.b16 %v1594, %v1593
      %v1688 = vpack.c.b16 %v1596, %v1595
      %v1689 = vpack.c.b16 %v1598, %v1597
      %v1690 = vpack.c.b16 %v1600, %v1599
      %v1691 = vpack.c.b16 %v1602, %v1601
      %v1692 = vpack.c.b16 %v1604, %v1603
      %v1693 = vpack.c.b16 %v1606, %v1605
      %v1694 = vpack.c.b16 %v1608, %v1607
      %v1695 = vpack.c.b16 %v1610, %v1609
      %v1696 = vpack.c.b16 %v1612, %v1611
      %v1697 = vpack.c.b16 %v1614, %v1613
      %v1698 = vpack.c.b16 %v1616, %v1615
      %v1699 = vpack.c.b16 %v1618, %v1617
      %v1700 = vpack.c.b16 %v1620, %v1619
      %v1701 = vpack.c.b16 %v1622, %v1621
      %v1702 = vpack.c.b16 %v1624, %v1623
      %v1703 = vpack.c.b16 %v1626, %v1625
      %v1704 = vpack.c.b16 %v1628, %v1627
      %v1705 = vpack.c.b16 %v1630, %v1629
      %v1706 = vpack.c.b16 %v1632, %v1631
      %v1707 = vpack.c.b16 %v1634, %v1633
      %v1708 = vpack.c.b16 %v1636, %v1635
      %v1709 = vpack.c.b16 %v1638, %v1637
      %v1710 = vpack.c.b16 %v1640, %v1639
      %v1711 = vpack.c.b16 %v1642, %v1641
      %v1712 = vpack.c.b16 %v1644, %v1643
      %v1713 = vpack.c.b16 %v1646, %v1645
      %v1714 = vpack.c.b16 %v1648, %v1647
      %v1715 = vpack.c.b16 %v1650, %v1649
      %v1716 = vpack.c.b16 %v1652, %v1651
      %1781 = vst [vmem:[#allocation8] sm:$0xff] %v1653
      %1782 = vst [vmem:[#allocation8 + $0x8] sm:$0xff] %v1654
      %1783 = vst [vmem:[#allocation8 + $0x10] sm:$0xff] %v1655
      %1784 = vst [vmem:[#allocation8 + $0x18] sm:$0xff] %v1656
      %1785 = vst [vmem:[#allocation8 + $0x20] sm:$0xff] %v1657
      %1786 = vst [vmem:[#allocation8 + $0x28] sm:$0xff] %v1658
      %1787 = vst [vmem:[#allocation8 + $0x30] sm:$0xff] %v1659
      %1788 = vst [vmem:[#allocation8 + $0x38] sm:$0xff] %v1660
      %1789 = vst [vmem:[#allocation8 + $0x40] sm:$0xff] %v1661
      %1790 = vst [vmem:[#allocation8 + $0x48] sm:$0xff] %v1662
      %1791 = vst [vmem:[#allocation8 + $0x50] sm:$0xff] %v1663
      %1792 = vst [vmem:[#allocation8 + $0x58] sm:$0xff] %v1664
      %1793 = vst [vmem:[#allocation8 + $0x60] sm:$0xff] %v1665
      %1794 = vst [vmem:[#allocation8 + $0x68] sm:$0xff] %v1666
      %1795 = vst [vmem:[#allocation8 + $0x70] sm:$0xff] %v1667
      %1796 = vst [vmem:[#allocation8 + $0x78] sm:$0xff] %v1668
      %1797 = vst [vmem:[#allocation8 + $0x80] sm:$0xff] %v1669
      %1798 = vst [vmem:[#allocation8 + $0x88] sm:$0xff] %v1670
      %1799 = vst [vmem:[#allocation8 + $0x90] sm:$0xff] %v1671
      %1800 = vst [vmem:[#allocation8 + $0x98] sm:$0xff] %v1672
      %1801 = vst [vmem:[#allocation8 + $0xa0] sm:$0xff] %v1673
      %1802 = vst [vmem:[#allocation8 + $0xa8] sm:$0xff] %v1674
      %1803 = vst [vmem:[#allocation8 + $0xb0] sm:$0xff] %v1675
      %1804 = vst [vmem:[#allocation8 + $0xb8] sm:$0xff] %v1676
      %1805 = vst [vmem:[#allocation8 + $0xc0] sm:$0xff] %v1677
      %1806 = vst [vmem:[#allocation8 + $0xc8] sm:$0xff] %v1678
      %1807 = vst [vmem:[#allocation8 + $0xd0] sm:$0xff] %v1679
      %1808 = vst [vmem:[#allocation8 + $0xd8] sm:$0xff] %v1680
      %1809 = vst [vmem:[#allocation8 + $0xe0] sm:$0xff] %v1681
      %1810 = vst [vmem:[#allocation8 + $0xe8] sm:$0xff] %v1682
      %1811 = vst [vmem:[#allocation8 + $0xf0] sm:$0xff] %v1683
      %1812 = vst [vmem:[#allocation8 + $0xf8] sm:$0xff] %v1684
      %1813 = vst [vmem:[#allocation8 + $0x100] sm:$0xff] %v1685
      %1814 = vst [vmem:[#allocation8 + $0x108] sm:$0xff] %v1686
      %1815 = vst [vmem:[#allocation8 + $0x110] sm:$0xff] %v1687
      %1816 = vst [vmem:[#allocation8 + $0x118] sm:$0xff] %v1688
      %1817 = vst [vmem:[#allocation8 + $0x120] sm:$0xff] %v1689
      %1818 = vst [vmem:[#allocation8 + $0x128] sm:$0xff] %v1690
      %1819 = vst [vmem:[#allocation8 + $0x130] sm:$0xff] %v1691
      %1820 = vst [vmem:[#allocation8 + $0x138] sm:$0xff] %v1692
      %1821 = vst [vmem:[#allocation8 + $0x140] sm:$0xff] %v1693
      %1822 = vst [vmem:[#allocation8 + $0x148] sm:$0xff] %v1694
      %1823 = vst [vmem:[#allocation8 + $0x150] sm:$0xff] %v1695
      %1824 = vst [vmem:[#allocation8 + $0x158] sm:$0xff] %v1696
      %1825 = vst [vmem:[#allocation8 + $0x160] sm:$0xff] %v1697
      %1826 = vst [vmem:[#allocation8 + $0x168] sm:$0xff] %v1698
      %1827 = vst [vmem:[#allocation8 + $0x170] sm:$0xff] %v1699
      %1828 = vst [vmem:[#allocation8 + $0x178] sm:$0xff] %v1700
      %1829 = vst [vmem:[#allocation8 + $0x180] sm:$0xff] %v1701
      %1830 = vst [vmem:[#allocation8 + $0x188] sm:$0xff] %v1702
      %1831 = vst [vmem:[#allocation8 + $0x190] sm:$0xff] %v1703
      %1832 = vst [vmem:[#allocation8 + $0x198] sm:$0xff] %v1704
      %1833 = vst [vmem:[#allocation8 + $0x1a0] sm:$0xff] %v1705
      %1834 = vst [vmem:[#allocation8 + $0x1a8] sm:$0xff] %v1706
      %1835 = vst [vmem:[#allocation8 + $0x1b0] sm:$0xff] %v1707
      %1836 = vst [vmem:[#allocation8 + $0x1b8] sm:$0xff] %v1708
      %1837 = vst [vmem:[#allocation8 + $0x1c0] sm:$0xff] %v1709
      %1838 = vst [vmem:[#allocation8 + $0x1c8] sm:$0xff] %v1710
      %1839 = vst [vmem:[#allocation8 + $0x1d0] sm:$0xff] %v1711
      %1840 = vst [vmem:[#allocation8 + $0x1d8] sm:$0xff] %v1712
      %1841 = vst [vmem:[#allocation8 + $0x1e0] sm:$0xff] %v1713
      %1842 = vst [vmem:[#allocation8 + $0x1e8] sm:$0xff] %v1714
      %1843 = vst [vmem:[#allocation8 + $0x1f0] sm:$0xff] %v1715
      %1844 = vst [vmem:[#allocation8 + $0x1f8] sm:$0xff] %v1716
      %v1845 = vadd.f32 %v1269, %v1271
      %v1846 = vadd.f32 %v1845, %v1273
      %v1847 = vadd.f32 %v1846, %v1275
      %v1848 = vadd.f32 %v1847, %v1277
      %v1849 = vadd.f32 %v1848, %v1279
      %v1850 = vadd.f32 %v1849, %v1281
      %v1851 = vadd.f32 %v1850, %v1283
      %v1852 = vadd.f32 %v1851, %v1285
      %v1853 = vadd.f32 %v1852, %v1287
      %v1854 = vadd.f32 %v1853, %v1289
      %v1855 = vadd.f32 %v1854, %v1291
      %v1856 = vadd.f32 %v1855, %v1293
      %v1857 = vadd.f32 %v1856, %v1295
      %v1858 = vadd.f32 %v1857, %v1297
      %v1859 = vadd.f32 %v1858, %v1299
      %v1860 = vadd.f32 %v1859, %v1301
      %v1861 = vadd.f32 %v1860, %v1303
      %v1862 = vadd.f32 %v1861, %v1305
      %v1863 = vadd.f32 %v1862, %v1307
      %v1864 = vadd.f32 %v1863, %v1309
      %v1865 = vadd.f32 %v1864, %v1311
      %v1866 = vadd.f32 %v1865, %v1313
      %v1867 = vadd.f32 %v1866, %v1315
      %v1868 = vadd.f32 %v1867, %v1317
      %v1869 = vadd.f32 %v1868, %v1319
      %v1870 = vadd.f32 %v1869, %v1321
      %v1871 = vadd.f32 %v1870, %v1323
      %v1872 = vadd.f32 %v1871, %v1325
      %v1873 = vadd.f32 %v1872, %v1327
      %v1874 = vadd.f32 %v1873, %v1329
      %v1875 = vadd.f32 %v1874, %v1331
      %v1876 = vadd.f32 %v1875, %v1333
      %v1877 = vadd.f32 %v1876, %v1335
      %v1878 = vadd.f32 %v1877, %v1337
      %v1879 = vadd.f32 %v1878, %v1339
      %v1880 = vadd.f32 %v1879, %v1341
      %v1881 = vadd.f32 %v1880, %v1343
      %v1882 = vadd.f32 %v1881, %v1345
      %v1883 = vadd.f32 %v1882, %v1347
      %v1884 = vadd.f32 %v1883, %v1349
      %v1885 = vadd.f32 %v1884, %v1351
      %v1886 = vadd.f32 %v1885, %v1353
      %v1887 = vadd.f32 %v1886, %v1355
      %v1888 = vadd.f32 %v1887, %v1357
      %v1889 = vadd.f32 %v1888, %v1359
      %v1890 = vadd.f32 %v1889, %v1361
      %v1891 = vadd.f32 %v1890, %v1363
      %v1892 = vadd.f32 %v1891, %v1365
      %v1893 = vadd.f32 %v1892, %v1367
      %v1894 = vadd.f32 %v1893, %v1369
      %v1895 = vadd.f32 %v1894, %v1371
      %v1896 = vadd.f32 %v1895, %v1373
      %v1897 = vadd.f32 %v1896, %v1375
      %v1898 = vadd.f32 %v1897, %v1377
      %v1899 = vadd.f32 %v1898, %v1379
      %v1900 = vadd.f32 %v1899, %v1381
      %v1901 = vadd.f32 %v1900, %v1383
      %v1902 = vadd.f32 %v1901, %v1385
      %v1903 = vadd.f32 %v1902, %v1387
      %v1904 = vadd.f32 %v1903, %v1389
      %v1905 = vadd.f32 %v1904, %v1391
      %v1906 = vadd.f32 %v1905, %v1393
      %v1907 = vadd.f32 %v1906, %v1395
      %v1908 = vrot.slane %v1907, 4
      %v1909 = vadd.f32 %v1907, %v1908
      %v1910 = vrot.slane %v1909, 2
      %v1911 = vadd.f32 %v1909, %v1910
      %v1912 = vrot.slane %v1911, 1
      %v1913 = vadd.f32 %v1911, %v1912
      %v1914 = vadd.f32 %v1270, %v1272
      %v1915 = vadd.f32 %v1914, %v1274
      %v1916 = vadd.f32 %v1915, %v1276
      %v1917 = vadd.f32 %v1916, %v1278
      %v1918 = vadd.f32 %v1917, %v1280
      %v1919 = vadd.f32 %v1918, %v1282
      %v1920 = vadd.f32 %v1919, %v1284
      %v1921 = vadd.f32 %v1920, %v1286
      %v1922 = vadd.f32 %v1921, %v1288
      %v1923 = vadd.f32 %v1922, %v1290
      %v1924 = vadd.f32 %v1923, %v1292
      %v1925 = vadd.f32 %v1924, %v1294
      %v1926 = vadd.f32 %v1925, %v1296
      %v1927 = vadd.f32 %v1926, %v1298
      %v1928 = vadd.f32 %v1927, %v1300
      %v1929 = vadd.f32 %v1928, %v1302
      %v1930 = vadd.f32 %v1929, %v1304
      %v1931 = vadd.f32 %v1930, %v1306
      %v1932 = vadd.f32 %v1931, %v1308
      %v1933 = vadd.f32 %v1932, %v1310
      %v1934 = vadd.f32 %v1933, %v1312
      %v1935 = vadd.f32 %v1934, %v1314
      %v1936 = vadd.f32 %v1935, %v1316
      %v1937 = vadd.f32 %v1936, %v1318
      %v1938 = vadd.f32 %v1937, %v1320
      %v1939 = vadd.f32 %v1938, %v1322
      %v1940 = vadd.f32 %v1939, %v1324
      %v1941 = vadd.f32 %v1940, %v1326
      %v1942 = vadd.f32 %v1941, %v1328
      %v1943 = vadd.f32 %v1942, %v1330
      %v1944 = vadd.f32 %v1943, %v1332
      %v1945 = vadd.f32 %v1944, %v1334
      %v1946 = vadd.f32 %v1945, %v1336
      %v1947 = vadd.f32 %v1946, %v1338
      %v1948 = vadd.f32 %v1947, %v1340
      %v1949 = vadd.f32 %v1948, %v1342
      %v1950 = vadd.f32 %v1949, %v1344
      %v1951 = vadd.f32 %v1950, %v1346
      %v1952 = vadd.f32 %v1951, %v1348
      %v1953 = vadd.f32 %v1952, %v1350
      %v1954 = vadd.f32 %v1953, %v1352
      %v1955 = vadd.f32 %v1954, %v1354
      %v1956 = vadd.f32 %v1955, %v1356
      %v1957 = vadd.f32 %v1956, %v1358
      %v1958 = vadd.f32 %v1957, %v1360
      %v1959 = vadd.f32 %v1958, %v1362
      %v1960 = vadd.f32 %v1959, %v1364
      %v1961 = vadd.f32 %v1960, %v1366
      %v1962 = vadd.f32 %v1961, %v1368
      %v1963 = vadd.f32 %v1962, %v1370
      %v1964 = vadd.f32 %v1963, %v1372
      %v1965 = vadd.f32 %v1964, %v1374
      %v1966 = vadd.f32 %v1965, %v1376
      %v1967 = vadd.f32 %v1966, %v1378
      %v1968 = vadd.f32 %v1967, %v1380
      %v1969 = vadd.f32 %v1968, %v1382
      %v1970 = vadd.f32 %v1969, %v1384
      %v1971 = vadd.f32 %v1970, %v1386
      %v1972 = vadd.f32 %v1971, %v1388
      %v1973 = vadd.f32 %v1972, %v1390
      %v1974 = vadd.f32 %v1973, %v1392
      %v1975 = vadd.f32 %v1974, %v1394
      %v1976 = vadd.f32 %v1975, %v1396
      %v1977 = vrot.slane %v1976, 4
      %v1978 = vadd.f32 %v1976, %v1977
      %v1979 = vrot.slane %v1978, 2
      %v1980 = vadd.f32 %v1978, %v1979
      %v1981 = vrot.slane %v1980, 1
      %v1982 = vadd.f32 %v1980, %v1981
      %v1985 = vcombine.low %v1913, %v1982
      %v1987 = vunpack.c.l.s4 1966171168
      %v1988 = vunpack.c.0.s8 %v1987
      %v1989 = vlaneseq
      %v1990 = vshrl.u32 %v1989, 7
      %v1991 = vsub.s32 %v1988, %v1990
      %v1992 = vrot.slane %v1985, %v1991
      %v1994 = vunpack.c.l.s4 1966171168
      %v1995 = vunpack.c.0.s8 %v1994
      %v1996 = vlaneseq
      %v1997 = vshrl.u32 %v1996, 7
      %v1998 = vsub.s32 %v1995, %v1997
      %v1999 = vrot.slane %v1992, %v1998
      %v2001 = vlaneseq
      %vm2002 = vcmp.ge.s32.totalorder %v2001, 0
      %vm2003 = vcmp.lt.s32.totalorder %v2001, 256
      %vm2004 = vmand %vm2002, %vm2003
      %2005 = vst.msk [vmem:[#allocation9] sm:$0x3] %vm2004, %v1999
      %v2006 = vmul.f32 %v1269, %v1269
      %v2007 = vmul.f32 %v1270, %v1270
      %v2008 = vmul.f32 %v1271, %v1271
      %v2009 = vmul.f32 %v1272, %v1272
      %v2010 = vmul.f32 %v1273, %v1273
      %v2011 = vmul.f32 %v1274, %v1274
      %v2012 = vmul.f32 %v1275, %v1275
      %v2013 = vmul.f32 %v1276, %v1276
      %v2014 = vmul.f32 %v1277, %v1277
      %v2015 = vmul.f32 %v1278, %v1278
      %v2016 = vmul.f32 %v1279, %v1279
      %v2017 = vmul.f32 %v1280, %v1280
      %v2018 = vmul.f32 %v1281, %v1281
      %v2019 = vmul.f32 %v1282, %v1282
      %v2020 = vmul.f32 %v1283, %v1283
      %v2021 = vmul.f32 %v1284, %v1284
      %v2022 = vmul.f32 %v1285, %v1285
      %v2023 = vmul.f32 %v1286, %v1286
      %v2024 = vmul.f32 %v1287, %v1287
      %v2025 = vmul.f32 %v1288, %v1288
      %v2026 = vmul.f32 %v1289, %v1289
      %v2027 = vmul.f32 %v1290, %v1290
      %v2028 = vmul.f32 %v1291, %v1291
      %v2029 = vmul.f32 %v1292, %v1292
      %v2030 = vmul.f32 %v1293, %v1293
      %v2031 = vmul.f32 %v1294, %v1294
      %v2032 = vmul.f32 %v1295, %v1295
      %v2033 = vmul.f32 %v1296, %v1296
      %v2034 = vmul.f32 %v1297, %v1297
      %v2035 = vmul.f32 %v1298, %v1298
      %v2036 = vmul.f32 %v1299, %v1299
      %v2037 = vmul.f32 %v1300, %v1300
      %v2038 = vmul.f32 %v1301, %v1301
      %v2039 = vmul.f32 %v1302, %v1302
      %v2040 = vmul.f32 %v1303, %v1303
      %v2041 = vmul.f32 %v1304, %v1304
      %v2042 = vmul.f32 %v1305, %v1305
      %v2043 = vmul.f32 %v1306, %v1306
      %v2044 = vmul.f32 %v1307, %v1307
      %v2045 = vmul.f32 %v1308, %v1308
      %v2046 = vmul.f32 %v1309, %v1309
      %v2047 = vmul.f32 %v1310, %v1310
      %v2048 = vmul.f32 %v1311, %v1311
      %v2049 = vmul.f32 %v1312, %v1312
      %v2050 = vmul.f32 %v1313, %v1313
      %v2051 = vmul.f32 %v1314, %v1314
      %v2052 = vmul.f32 %v1315, %v1315
      %v2053 = vmul.f32 %v1316, %v1316
      %v2054 = vmul.f32 %v1317, %v1317
      %v2055 = vmul.f32 %v1318, %v1318
      %v2056 = vmul.f32 %v1319, %v1319
      %v2057 = vmul.f32 %v1320, %v1320
      %v2058 = vmul.f32 %v1321, %v1321
      %v2059 = vmul.f32 %v1322, %v1322
      %v2060 = vmul.f32 %v1323, %v1323
      %v2061 = vmul.f32 %v1324, %v1324
      %v2062 = vmul.f32 %v1325, %v1325
      %v2063 = vmul.f32 %v1326, %v1326
      %v2064 = vmul.f32 %v1327, %v1327
      %v2065 = vmul.f32 %v1328, %v1328
      %v2066 = vmul.f32 %v1329, %v1329
      %v2067 = vmul.f32 %v1330, %v1330
      %v2068 = vmul.f32 %v1331, %v1331
      %v2069 = vmul.f32 %v1332, %v1332
      %v2070 = vmul.f32 %v1333, %v1333
      %v2071 = vmul.f32 %v1334, %v1334
      %v2072 = vmul.f32 %v1335, %v1335
      %v2073 = vmul.f32 %v1336, %v1336
      %v2074 = vmul.f32 %v1337, %v1337
      %v2075 = vmul.f32 %v1338, %v1338
      %v2076 = vmul.f32 %v1339, %v1339
      %v2077 = vmul.f32 %v1340, %v1340
      %v2078 = vmul.f32 %v1341, %v1341
      %v2079 = vmul.f32 %v1342, %v1342
      %v2080 = vmul.f32 %v1343, %v1343
      %v2081 = vmul.f32 %v1344, %v1344
      %v2082 = vmul.f32 %v1345, %v1345
      %v2083 = vmul.f32 %v1346, %v1346
      %v2084 = vmul.f32 %v1347, %v1347
      %v2085 = vmul.f32 %v1348, %v1348
      %v2086 = vmul.f32 %v1349, %v1349
      %v2087 = vmul.f32 %v1350, %v1350
      %v2088 = vmul.f32 %v1351, %v1351
      %v2089 = vmul.f32 %v1352, %v1352
      %v2090 = vmul.f32 %v1353, %v1353
      %v2091 = vmul.f32 %v1354, %v1354
      %v2092 = vmul.f32 %v1355, %v1355
      %v2093 = vmul.f32 %v1356, %v1356
      %v2094 = vmul.f32 %v1357, %v1357
      %v2095 = vmul.f32 %v1358, %v1358
      %v2096 = vmul.f32 %v1359, %v1359
      %v2097 = vmul.f32 %v1360, %v1360
      %v2098 = vmul.f32 %v1361, %v1361
      %v2099 = vmul.f32 %v1362, %v1362
      %v2100 = vmul.f32 %v1363, %v1363
      %v2101 = vmul.f32 %v1364, %v1364
      %v2102 = vmul.f32 %v1365, %v1365
      %v2103 = vmul.f32 %v1366, %v1366
      %v2104 = vmul.f32 %v1367, %v1367
      %v2105 = vmul.f32 %v1368, %v1368
      %v2106 = vmul.f32 %v1369, %v1369
      %v2107 = vmul.f32 %v1370, %v1370
      %v2108 = vmul.f32 %v1371, %v1371
      %v2109 = vmul.f32 %v1372, %v1372
      %v2110 = vmul.f32 %v1373, %v1373
      %v2111 = vmul.f32 %v1374, %v1374
      %v2112 = vmul.f32 %v1375, %v1375
      %v2113 = vmul.f32 %v1376, %v1376
      %v2114 = vmul.f32 %v1377, %v1377
      %v2115 = vmul.f32 %v1378, %v1378
      %v2116 = vmul.f32 %v1379, %v1379
      %v2117 = vmul.f32 %v1380, %v1380
      %v2118 = vmul.f32 %v1381, %v1381
      %v2119 = vmul.f32 %v1382, %v1382
      %v2120 = vmul.f32 %v1383, %v1383
      %v2121 = vmul.f32 %v1384, %v1384
      %v2122 = vmul.f32 %v1385, %v1385
      %v2123 = vmul.f32 %v1386, %v1386
      %v2124 = vmul.f32 %v1387, %v1387
      %v2125 = vmul.f32 %v1388, %v1388
      %v2126 = vmul.f32 %v1389, %v1389
      %v2127 = vmul.f32 %v1390, %v1390
      %v2128 = vmul.f32 %v1391, %v1391
      %v2129 = vmul.f32 %v1392, %v1392
      %v2130 = vmul.f32 %v1393, %v1393
      %v2131 = vmul.f32 %v1394, %v1394
      %v2132 = vmul.f32 %v1395, %v1395
      %v2133 = vmul.f32 %v1396, %v1396
      %v2134 = vadd.f32 %v2006, %v2008
      %v2135 = vadd.f32 %v2134, %v2010
      %v2136 = vadd.f32 %v2135, %v2012
      %v2137 = vadd.f32 %v2136, %v2014
      %v2138 = vadd.f32 %v2137, %v2016
      %v2139 = vadd.f32 %v2138, %v2018
      %v2140 = vadd.f32 %v2139, %v2020
      %v2141 = vadd.f32 %v2140, %v2022
      %v2142 = vadd.f32 %v2141, %v2024
      %v2143 = vadd.f32 %v2142, %v2026
      %v2144 = vadd.f32 %v2143, %v2028
      %v2145 = vadd.f32 %v2144, %v2030
      %v2146 = vadd.f32 %v2145, %v2032
      %v2147 = vadd.f32 %v2146, %v2034
      %v2148 = vadd.f32 %v2147, %v2036
      %v2149 = vadd.f32 %v2148, %v2038
      %v2150 = vadd.f32 %v2149, %v2040
      %v2151 = vadd.f32 %v2150, %v2042
      %v2152 = vadd.f32 %v2151, %v2044
      %v2153 = vadd.f32 %v2152, %v2046
      %v2154 = vadd.f32 %v2153, %v2048
      %v2155 = vadd.f32 %v2154, %v2050
      %v2156 = vadd.f32 %v2155, %v2052
      %v2157 = vadd.f32 %v2156, %v2054
      %v2158 = vadd.f32 %v2157, %v2056
      %v2159 = vadd.f32 %v2158, %v2058
      %v2160 = vadd.f32 %v2159, %v2060
      %v2161 = vadd.f32 %v2160, %v2062
      %v2162 = vadd.f32 %v2161, %v2064
      %v2163 = vadd.f32 %v2162, %v2066
      %v2164 = vadd.f32 %v2163, %v2068
      %v2165 = vadd.f32 %v2164, %v2070
      %v2166 = vadd.f32 %v2165, %v2072
      %v2167 = vadd.f32 %v2166, %v2074
      %v2168 = vadd.f32 %v2167, %v2076
      %v2169 = vadd.f32 %v2168, %v2078
      %v2170 = vadd.f32 %v2169, %v2080
      %v2171 = vadd.f32 %v2170, %v2082
      %v2172 = vadd.f32 %v2171, %v2084
      %v2173 = vadd.f32 %v2172, %v2086
      %v2174 = vadd.f32 %v2173, %v2088
      %v2175 = vadd.f32 %v2174, %v2090
      %v2176 = vadd.f32 %v2175, %v2092
      %v2177 = vadd.f32 %v2176, %v2094
      %v2178 = vadd.f32 %v2177, %v2096
      %v2179 = vadd.f32 %v2178, %v2098
      %v2180 = vadd.f32 %v2179, %v2100
      %v2181 = vadd.f32 %v2180, %v2102
      %v2182 = vadd.f32 %v2181, %v2104
      %v2183 = vadd.f32 %v2182, %v2106
      %v2184 = vadd.f32 %v2183, %v2108
      %v2185 = vadd.f32 %v2184, %v2110
      %v2186 = vadd.f32 %v2185, %v2112
      %v2187 = vadd.f32 %v2186, %v2114
      %v2188 = vadd.f32 %v2187, %v2116
      %v2189 = vadd.f32 %v2188, %v2118
      %v2190 = vadd.f32 %v2189, %v2120
      %v2191 = vadd.f32 %v2190, %v2122
      %v2192 = vadd.f32 %v2191, %v2124
      %v2193 = vadd.f32 %v2192, %v2126
      %v2194 = vadd.f32 %v2193, %v2128
      %v2195 = vadd.f32 %v2194, %v2130
      %v2196 = vadd.f32 %v2195, %v2132
      %v2197 = vrot.slane %v2196, 4
      %v2198 = vadd.f32 %v2196, %v2197
      %v2199 = vrot.slane %v2198, 2
      %v2200 = vadd.f32 %v2198, %v2199
      %v2201 = vrot.slane %v2200, 1
      %v2202 = vadd.f32 %v2200, %v2201
      %v2203 = vadd.f32 %v2007, %v2009
      %v2204 = vadd.f32 %v2203, %v2011
      %v2205 = vadd.f32 %v2204, %v2013
      %v2206 = vadd.f32 %v2205, %v2015
      %v2207 = vadd.f32 %v2206, %v2017
      %v2208 = vadd.f32 %v2207, %v2019
      %v2209 = vadd.f32 %v2208, %v2021
      %v2210 = vadd.f32 %v2209, %v2023
      %v2211 = vadd.f32 %v2210, %v2025
      %v2212 = vadd.f32 %v2211, %v2027
      %v2213 = vadd.f32 %v2212, %v2029
      %v2214 = vadd.f32 %v2213, %v2031
      %v2215 = vadd.f32 %v2214, %v2033
      %v2216 = vadd.f32 %v2215, %v2035
      %v2217 = vadd.f32 %v2216, %v2037
      %v2218 = vadd.f32 %v2217, %v2039
      %v2219 = vadd.f32 %v2218, %v2041
      %v2220 = vadd.f32 %v2219, %v2043
      %v2221 = vadd.f32 %v2220, %v2045
      %v2222 = vadd.f32 %v2221, %v2047
      %v2223 = vadd.f32 %v2222, %v2049
      %v2224 = vadd.f32 %v2223, %v2051
      %v2225 = vadd.f32 %v2224, %v2053
      %v2226 = vadd.f32 %v2225, %v2055
      %v2227 = vadd.f32 %v2226, %v2057
      %v2228 = vadd.f32 %v2227, %v2059
      %v2229 = vadd.f32 %v2228, %v2061
      %v2230 = vadd.f32 %v2229, %v2063
      %v2231 = vadd.f32 %v2230, %v2065
      %v2232 = vadd.f32 %v2231, %v2067
      %v2233 = vadd.f32 %v2232, %v2069
      %v2234 = vadd.f32 %v2233, %v2071
      %v2235 = vadd.f32 %v2234, %v2073
      %v2236 = vadd.f32 %v2235, %v2075
      %v2237 = vadd.f32 %v2236, %v2077
      %v2238 = vadd.f32 %v2237, %v2079
      %v2239 = vadd.f32 %v2238, %v2081
      %v2240 = vadd.f32 %v2239, %v2083
      %v2241 = vadd.f32 %v2240, %v2085
      %v2242 = vadd.f32 %v2241, %v2087
      %v2243 = vadd.f32 %v2242, %v2089
      %v2244 = vadd.f32 %v2243, %v2091
      %v2245 = vadd.f32 %v2244, %v2093
      %v2246 = vadd.f32 %v2245, %v2095
      %v2247 = vadd.f32 %v2246, %v2097
      %v2248 = vadd.f32 %v2247, %v2099
      %v2249 = vadd.f32 %v2248, %v2101
      %v2250 = vadd.f32 %v2249, %v2103
      %v2251 = vadd.f32 %v2250, %v2105
      %v2252 = vadd.f32 %v2251, %v2107
      %v2253 = vadd.f32 %v2252, %v2109
      %v2254 = vadd.f32 %v2253, %v2111
      %v2255 = vadd.f32 %v2254, %v2113
      %v2256 = vadd.f32 %v2255, %v2115
      %v2257 = vadd.f32 %v2256, %v2117
      %v2258 = vadd.f32 %v2257, %v2119
      %v2259 = vadd.f32 %v2258, %v2121
      %v2260 = vadd.f32 %v2259, %v2123
      %v2261 = vadd.f32 %v2260, %v2125
      %v2262 = vadd.f32 %v2261, %v2127
      %v2263 = vadd.f32 %v2262, %v2129
      %v2264 = vadd.f32 %v2263, %v2131
      %v2265 = vadd.f32 %v2264, %v2133
      %v2266 = vrot.slane %v2265, 4
      %v2267 = vadd.f32 %v2265, %v2266
      %v2268 = vrot.slane %v2267, 2
      %v2269 = vadd.f32 %v2267, %v2268
      %v2270 = vrot.slane %v2269, 1
      %v2271 = vadd.f32 %v2269, %v2270
      %v2274 = vcombine.low %v2202, %v2271
      %v2276 = vunpack.c.l.s4 1966171168
      %v2277 = vunpack.c.0.s8 %v2276
      %v2278 = vlaneseq
      %v2279 = vshrl.u32 %v2278, 7
      %v2280 = vsub.s32 %v2277, %v2279
      %v2281 = vrot.slane %v2274, %v2280
      %v2283 = vunpack.c.l.s4 1966171168
      %v2284 = vunpack.c.0.s8 %v2283
      %v2285 = vlaneseq
      %v2286 = vshrl.u32 %v2285, 7
      %v2287 = vsub.s32 %v2284, %v2286
      %v2288 = vrot.slane %v2281, %v2287
      %2290 = vst.msk [vmem:[#allocation11] sm:$0x3] %vm2004, %v2288
    $region25: #{tpu_custom_call.1} parent=1 // pred_fallthru
      _
    // Predicated region
    $region26: #{tpu_custom_call.1} parent=1 // pred_check
      _
    $region27: #{tpu_custom_call.1} parent=1 // pred_check_branch
      %2292 = sbr.rel (0) target = $region29
    $region28: #{tpu_custom_call.1} parent=1 // pred_region
      %s2294 = ssub.s32 8192, 8192
      %2295 = vsyncadd [#allocation5], %s2294
      %s2296 = sshll.u32 [#allocation8], 4
      %s2297 = int_to_ptr.vmem [resolvable:$true] %s2296
      %2302 = dma.vmem_to_hbm [thread:$0]  %s2297, 8192, %s2, [#allocation5], 128, 128, 8
    $region29: #{tpu_custom_call.1} parent=1 // pred_fallthru
      _
    // Predicated region
    $region30: #{tpu_custom_call.1} parent=1 // pred_check
      _
    $region31: #{tpu_custom_call.1} parent=1 // pred_check_branch
      %2304 = sbr.rel (0) target = $region33
    $region32: #{tpu_custom_call.1} parent=1 // pred_region
      %s2306 = ssub.s32 32, 32
      %2307 = vsyncadd [#allocation10], %s2306
      %s2309 = sshll.u32 [#allocation9], 4
      %s2310 = int_to_ptr.vmem [resolvable:$true] %s2309
      %2312 = dma.vmem_to_hbm [thread:$0]  %s2310, 32, %s3, [#allocation10]
    $region33: #{tpu_custom_call.1} parent=1 // pred_fallthru
      _
    // Predicated region
    $region34: #{tpu_custom_call.1} parent=1 // pred_check
      _
    $region35: #{tpu_custom_call.1} parent=1 // pred_check_branch
      %2314 = sbr.rel (0) target = $region37
    $region36: #{tpu_custom_call.1} parent=1 // pred_region
      %s2316 = ssub.s32 32, 32
      %2317 = vsyncadd [#allocation10], %s2316
      %s2319 = sshll.u32 [#allocation11], 4
      %s2320 = int_to_ptr.vmem [resolvable:$true] %s2319
      %2322 = dma.vmem_to_hbm [thread:$0]  %s2320, 32, %s4, [#allocation10]
    $region37: #{tpu_custom_call.1} parent=1 // pred_fallthru
      _
    // Predicated region
    $region38: #{tpu_custom_call.1} parent=1 // pred_check
      _
    $region39: #{tpu_custom_call.1} parent=1 // pred_check_branch
      %2324 = sbr.rel (0) target = $region41
    $region40: #{tpu_custom_call.1} parent=1 // pred_region
      %2325 = dma.done [#allocation5], 8192
    $region41: #{tpu_custom_call.1} parent=1 // pred_fallthru
      _
    // Predicated region
    $region42: #{tpu_custom_call.1} parent=1 // pred_check
      _
    $region43: #{tpu_custom_call.1} parent=1 // pred_check_branch
      %2327 = sbr.rel (0) target = $region45
    $region44: #{tpu_custom_call.1} parent=1 // pred_region
      %2328 = dma.done [#allocation10], 32
    $region45: #{tpu_custom_call.1} parent=1 // pred_fallthru
      _
    // Predicated region
    $region46: #{tpu_custom_call.1} parent=1 // pred_check
      _
    $region47: #{tpu_custom_call.1} parent=1 // pred_check_branch
      %2330 = sbr.rel (0) target = $region49
    $region48: #{tpu_custom_call.1} parent=1 // pred_region
      %2331 = dma.done [#allocation10], 32
    $region49: #{tpu_custom_call.1} parent=1 // pred_fallthru
      _
    %2332 = vsyncpa [#allocation4], 1
    %2333 = vsyncpa [#allocation7], 1
    %2334 = vsyncpa [#allocation5], 1
    %2335 = vsyncpa [#allocation10], 1

</llo_original>
